<compile_context>
chip_gen: v7x
topology: tpu7x:2x2x1
jax: 0.10.0
libtpu: 0.0.40
codegen_flags: <defaults>
</compile_context>

<pallas_src>
import jax
import jax.numpy as jnp
from jax.experimental import pallas as pl
from jax.experimental.pallas import tpu as pltpu

# ---------------- small synthetic config ----------------
N_VIEWS   = 7          # forward() hard-codes 7 views
N_CLASSES = 5
B         = 2
H = W     = 16
Z_DIM     = 32         # stand-in for densenet201 z_dim (=1920 in the real model)
KH = KW   = 7
STRIDE    = 2
PAD       = 3
HO = (H + 2 * PAD - KH) // STRIDE + 1
WO = (W + 2 * PAD - KW) // STRIDE + 1
P  = HO * WO           # 64
K  = 1 * KH * KW       # 49
K_PAD     = 128        # lane-dense contraction dim for the stem matmul
FLOAT_HID = 64
CLS_HID   = 256
ROW_PAD   = 8          # pad batch rows to a full sublane group
OUT_PAD   = 128        # pad classifier output lanes to a full vreg width


# ---------------- fused Pallas kernel ----------------
def fused_forward_kernel(p_ref, sw_ref, pool_ref, ht_ref,
                         fw1_ref, fb1_ref, fw2_ref, fb2_ref,
                         cw1_ref, cb1_ref, cw2_ref, cb2_ref,
                         o_ref, zcat_ref):
    # ---- shared backbone stem: im2col matmul over ALL 7 views (bf16 MXU, f32 acc) + ReLU
    x = jnp.dot(p_ref[...], sw_ref[...], preferred_element_type=jnp.float32)   # [V*B*P, Z]
    x = jnp.maximum(x, 0.0)

    # ---- global average pool as a pooling-matrix matmul (MXU, no sublane reshape)
    pooled = jnp.dot(pool_ref[...], x, preferred_element_type=jnp.float32)     # [V*ROW_PAD, Z]

    # ---- float_pathway: Linear(1,64) is a K=1 outer product -> VPU broadcast (f32)
    h1 = jnp.maximum(ht_ref[...] * fw1_ref[...] + fb1_ref[...], 0.0)           # [ROW_PAD, 64]
    hfeat = jnp.dot(h1.astype(fw2_ref.dtype), fw2_ref[...],
                    preferred_element_type=jnp.float32) + fb2_ref[...]         # [ROW_PAD, Z]

    # ---- torch.cat((img1..img7, heights), dim=1): adjacent column writes into scratch
    for v in range(N_VIEWS):
        zcat_ref[:, v * Z_DIM:(v + 1) * Z_DIM] = pooled[v * ROW_PAD:(v + 1) * ROW_PAD, :]
    zcat_ref[:, N_VIEWS * Z_DIM:] = hfeat
    zcat = zcat_ref[...]                                                        # [ROW_PAD, (V+1)*Z]

    # ---- classifier MLP: Linear -> ReLU -> Linear (bf16 MXU, f32 elementwise)
    hid = jnp.maximum(
        jnp.dot(zcat.astype(cw1_ref.dtype), cw1_ref[...],
                preferred_element_type=jnp.float32) + cb1_ref[...], 0.0)        # [ROW_PAD, 256]
    o_ref[...] = (jnp.dot(hid.astype(cw2_ref.dtype), cw2_ref[...],
                          preferred_element_type=jnp.float32)
                  + cb2_ref[...]).astype(o_ref.dtype)                           # [ROW_PAD, OUT_PAD]


# ---------------- wrapper glue (plain JAX) ----------------
def _extract_patches(imgs):
    """imgs: [N, 1, H, W] (NCHW) -> im2col patches [N, P, K]."""
    p = jax.lax.conv_general_dilated_patches(
        imgs, filter_shape=(KH, KW), window_strides=(STRIDE, STRIDE),
        padding=[(PAD, PAD), (PAD, PAD)])                 # [N, K, HO, WO]
    return p.transpose(0, 2, 3, 1).reshape(imgs.shape[0], P, K)


def _pool_matrix():
    """[V*ROW_PAD, V*B*P] block matrix: row v*8+b averages the P rows of (view v, batch b)."""
    rows = N_VIEWS * ROW_PAD
    cols = N_VIEWS * B * P
    r = jnp.arange(rows)
    c = jnp.arange(cols)
    rv, rb = r // ROW_PAD, r % ROW_PAD
    cv, cb = c // (B * P), (c // P) % B
    sel = (rv[:, None] == cv[None, :]) & (rb[:, None] == cb[None, :]) & (rb[:, None] < B)
    return sel.astype(jnp.float32) / P


def parallel_densenet_forward(params, inputs, heights):
    """inputs: [B, 7, 1, H, W], heights: [B] -> logits [B, N_CLASSES]."""
    bn, v = inputs.shape[0], inputs.shape[1]

    # view-major rows (v, b, p) so the in-kernel column concat matches torch.cat(dim=1)
    imgs = inputs.transpose(1, 0, 2, 3, 4).reshape(v * bn, 1, H, W)
    patches = _extract_patches(imgs).reshape(v * bn * P, K)
    patches = jnp.pad(patches, ((0, 0), (0, K_PAD - K))).astype(jnp.bfloat16)

    stem_w = jnp.pad(params["stem_w"], ((0, K_PAD - K), (0, 0))).astype(jnp.bfloat16)
    pool_mat = _pool_matrix()
    heights_pad = jnp.zeros((ROW_PAD, 1), jnp.float32).at[:bn, 0].set(heights)

    cls_w2 = jnp.pad(params["cls_w2"], ((0, 0), (0, OUT_PAD - N_CLASSES))).astype(jnp.bfloat16)
    cls_b2 = jnp.pad(params["cls_b2"], ((0, 0), (0, OUT_PAD - N_CLASSES)))

    args = (patches, stem_w, pool_mat, heights_pad,
            params["fp_w1"], params["fp_b1"],
            params["fp_w2"].astype(jnp.bfloat16), params["fp_b2"],
            params["cls_w1"].astype(jnp.bfloat16), params["cls_b1"],
            cls_w2, cls_b2)

    full_spec = lambda s: pl.BlockSpec(s, lambda i: (0, 0))
    out = pl.pallas_call(
        fused_forward_kernel,
        out_shape=jax.ShapeDtypeStruct((ROW_PAD, OUT_PAD), jnp.float32),
        grid=(1,),
        in_specs=[full_spec(a.shape) for a in args],
        out_specs=full_spec((ROW_PAD, OUT_PAD)),
        scratch_shapes=[pltpu.VMEM((ROW_PAD, (N_VIEWS + 1) * Z_DIM), jnp.float32)],
        compiler_params=pltpu.CompilerParams(
            dimension_semantics=("arbitrary",),
            vmem_limit_bytes=16 * 1024 * 1024),
    )(*args)
    return out[:bn, :N_CLASSES]


def init_params(key):
    ks = jax.random.split(key, 7)
    # stem conv: init a 3-channel weight, then sum(dim=1, keepdim=True) as in __init__
    w3 = jax.random.normal(ks[0], (Z_DIM, 3, KH, KW), jnp.float32) * 0.05
    stem_w = w3.sum(axis=1, keepdims=True).reshape(Z_DIM, K).T          # [K, Z_DIM]
    params = {
        "stem_w": stem_w,
        # float_pathway: Linear(1, 64) -> ReLU -> Linear(64, z_dim)
        "fp_w1": jax.random.normal(ks[1], (1, FLOAT_HID), jnp.float32) * 0.1,
        "fp_b1": jnp.zeros((1, FLOAT_HID), jnp.float32),
        "fp_w2": jax.random.normal(ks[2], (FLOAT_HID, Z_DIM), jnp.float32) * 0.1,
        "fp_b2": jnp.zeros((1, Z_DIM), jnp.float32),
        # classifier: Linear(z_dim*(V+1), 256) -> ReLU -> Linear(256, n_classes)
        "cls_w1": jax.random.normal(ks[3], (Z_DIM * (N_VIEWS + 1), CLS_HID), jnp.float32) * 0.05,
        "cls_b1": jnp.zeros((1, CLS_HID), jnp.float32),
        "cls_w2": jax.random.normal(ks[4], (CLS_HID, N_CLASSES), jnp.float32) * 0.05,
        "cls_b2": jnp.zeros((1, N_CLASSES), jnp.float32),
    }
    return params


if __name__ == "__main__":
    key = jax.random.PRNGKey(0)
    k_in, k_h, k_p = jax.random.split(key, 3)
    inputs = jax.random.normal(k_in, (B, N_VIEWS, 1, H, W), jnp.float32)
    heights = jax.random.normal(k_h, (B,), jnp.float32)
    params = init_params(k_p)

    fwd = jax.jit(parallel_densenet_forward)
    out = fwd(params, inputs, heights)
    jax.block_until_ready(out)
    assert out.shape == (B, N_CLASSES), out.shape
    assert bool(jnp.all(jnp.isfinite(out)))
    print("KERNEL_OK")
</pallas_src>

<mosaic_0001>
module attributes {stable_mosaic.version = 11 : i64} {
  func.func @fused_forward_kernel(%arg0: i32, %arg1: memref<896x128xbf16, #tpu.memory_space<vmem>>, %arg2: memref<128x32xbf16, #tpu.memory_space<vmem>>, %arg3: memref<56x896xf32, #tpu.memory_space<vmem>>, %arg4: memref<8x1xf32, #tpu.memory_space<vmem>>, %arg5: memref<1x64xf32, #tpu.memory_space<vmem>>, %arg6: memref<1x64xf32, #tpu.memory_space<vmem>>, %arg7: memref<64x32xbf16, #tpu.memory_space<vmem>>, %arg8: memref<1x32xf32, #tpu.memory_space<vmem>>, %arg9: memref<256x256xbf16, #tpu.memory_space<vmem>>, %arg10: memref<1x256xf32, #tpu.memory_space<vmem>>, %arg11: memref<256x128xbf16, #tpu.memory_space<vmem>>, %arg12: memref<1x128xf32, #tpu.memory_space<vmem>>, %arg13: memref<8x128xf32, #tpu.memory_space<vmem>>, %arg14: memref<8x256xf32, #tpu.memory_space<vmem>>) attributes {dimension_semantics = [#tpu.dimension_semantics<arbitrary>], iteration_bounds = array<i64: 1>, scalar_prefetch = 0 : i64, scratch_operands = 1 : i64, tpu.core_type = #tpu.core_type<tc>, window_params = [{pipeline_mode = #tpu.pipeline_mode<synchronous>, transform_indices = @transform_0, window_bounds = array<i64: 896, 128>}, {pipeline_mode = #tpu.pipeline_mode<synchronous>, transform_indices = @transform_1, window_bounds = array<i64: 128, 32>}, {pipeline_mode = #tpu.pipeline_mode<synchronous>, transform_indices = @transform_2, window_bounds = array<i64: 56, 896>}, {pipeline_mode = #tpu.pipeline_mode<synchronous>, transform_indices = @transform_3, window_bounds = array<i64: 8, 1>}, {pipeline_mode = #tpu.pipeline_mode<synchronous>, transform_indices = @transform_4, window_bounds = array<i64: 1, 64>}, {pipeline_mode = #tpu.pipeline_mode<synchronous>, transform_indices = @transform_5, window_bounds = array<i64: 1, 64>}, {pipeline_mode = #tpu.pipeline_mode<synchronous>, transform_indices = @transform_6, window_bounds = array<i64: 64, 32>}, {pipeline_mode = #tpu.pipeline_mode<synchronous>, transform_indices = @transform_7, window_bounds = array<i64: 1, 32>}, {pipeline_mode = #tpu.pipeline_mode<synchronous>, transform_indices = @transform_8, window_bounds = array<i64: 256, 256>}, {pipeline_mode = #tpu.pipeline_mode<synchronous>, transform_indices = @transform_9, window_bounds = array<i64: 1, 256>}, {pipeline_mode = #tpu.pipeline_mode<synchronous>, transform_indices = @transform_10, window_bounds = array<i64: 256, 128>}, {pipeline_mode = #tpu.pipeline_mode<synchronous>, transform_indices = @transform_11, window_bounds = array<i64: 1, 128>}, {pipeline_mode = #tpu.pipeline_mode<synchronous>, transform_indices = @transform_12, window_bounds = array<i64: 8, 128>}]} {
    %c0 = arith.constant 0 : index
    %c0_0 = arith.constant 0 : index
    %0 = vector.load %arg1[%c0, %c0_0] : memref<896x128xbf16, #tpu.memory_space<vmem>>, vector<896x128xbf16>
    %c0_1 = arith.constant 0 : index
    %c0_2 = arith.constant 0 : index
    %1 = vector.load %arg2[%c0_1, %c0_2] : memref<128x32xbf16, #tpu.memory_space<vmem>>, vector<128x32xbf16>
    %cst = arith.constant dense<0.000000e+00> : vector<896x32xf32>
    %2 = tpu.matmul %0, %1, %cst {dimension_numbers = #tpu.dot_dimension_numbers<[1], [0], [0], [1], [0, 0, 1, 1], [], []>} : vector<896x128xbf16>, vector<128x32xbf16>, vector<896x32xf32> -> vector<896x32xf32>
    %cst_3 = arith.constant 0.000000e+00 : f32
    %3 = vector.broadcast %cst_3 : f32 to vector<896x32xf32>
    %4 = arith.maximumf %2, %3 : vector<896x32xf32>
    %c0_4 = arith.constant 0 : index
    %c0_5 = arith.constant 0 : index
    %5 = vector.load %arg3[%c0_4, %c0_5] : memref<56x896xf32, #tpu.memory_space<vmem>>, vector<56x896xf32>
    %cst_6 = arith.constant dense<0.000000e+00> : vector<56x32xf32>
    %6 = tpu.matmul %5, %4, %cst_6 {dimension_numbers = #tpu.dot_dimension_numbers<[1], [0], [0], [1], [0, 0, 1, 1], [], []>} : vector<56x896xf32>, vector<896x32xf32>, vector<56x32xf32> -> vector<56x32xf32>
    %c0_7 = arith.constant 0 : index
    %c0_8 = arith.constant 0 : index
    %7 = vector.load %arg4[%c0_7, %c0_8] : memref<8x1xf32, #tpu.memory_space<vmem>>, vector<8x1xf32>
    %c0_9 = arith.constant 0 : index
    %c0_10 = arith.constant 0 : index
    %8 = vector.load %arg5[%c0_9, %c0_10] : memref<1x64xf32, #tpu.memory_space<vmem>>, vector<1x64xf32>
    %9 = vector.broadcast %7 : vector<8x1xf32> to vector<8x64xf32>
    %10 = vector.broadcast %8 : vector<1x64xf32> to vector<8x64xf32>
    %11 = arith.mulf %9, %10 : vector<8x64xf32>
    %c0_11 = arith.constant 0 : index
    %c0_12 = arith.constant 0 : index
    %12 = vector.load %arg6[%c0_11, %c0_12] : memref<1x64xf32, #tpu.memory_space<vmem>>, vector<1x64xf32>
    %13 = vector.broadcast %12 : vector<1x64xf32> to vector<8x64xf32>
    %14 = arith.addf %11, %13 : vector<8x64xf32>
    %cst_13 = arith.constant 0.000000e+00 : f32
    %15 = vector.broadcast %cst_13 : f32 to vector<8x64xf32>
    %16 = arith.maximumf %14, %15 : vector<8x64xf32>
    %17 = arith.truncf %16 : vector<8x64xf32> to vector<8x64xbf16>
    %c0_14 = arith.constant 0 : index
    %c0_15 = arith.constant 0 : index
    %18 = vector.load %arg7[%c0_14, %c0_15] : memref<64x32xbf16, #tpu.memory_space<vmem>>, vector<64x32xbf16>
    %cst_16 = arith.constant dense<0.000000e+00> : vector<8x32xf32>
    %19 = tpu.matmul %17, %18, %cst_16 {dimension_numbers = #tpu.dot_dimension_numbers<[1], [0], [0], [1], [0, 0, 1, 1], [], []>} : vector<8x64xbf16>, vector<64x32xbf16>, vector<8x32xf32> -> vector<8x32xf32>
    %c0_17 = arith.constant 0 : index
    %c0_18 = arith.constant 0 : index
    %20 = vector.load %arg8[%c0_17, %c0_18] : memref<1x32xf32, #tpu.memory_space<vmem>>, vector<1x32xf32>
    %21 = vector.broadcast %20 : vector<1x32xf32> to vector<8x32xf32>
    %22 = arith.addf %19, %21 : vector<8x32xf32>
    %23 = vector.extract_strided_slice %6 {offsets = [0, 0], sizes = [8, 32], strides = [1, 1]} : vector<56x32xf32> to vector<8x32xf32>
    %c0_19 = arith.constant 0 : index
    %c0_20 = arith.constant 0 : index
    %24 = vector.load %arg14[%c0_19, %c0_20] : memref<8x256xf32, #tpu.memory_space<vmem>>, vector<8x32xf32>
    tpu.vector_store %arg14[%c0_19, %c0_20], %23 {strides = array<i32>} : memref<8x256xf32, #tpu.memory_space<vmem>>, vector<8x32xf32>,
    %25 = vector.extract_strided_slice %6 {offsets = [8, 0], sizes = [8, 32], strides = [1, 1]} : vector<56x32xf32> to vector<8x32xf32>
    %c0_21 = arith.constant 0 : index
    %c32 = arith.constant 32 : index
    %26 = vector.load %arg14[%c0_21, %c32] : memref<8x256xf32, #tpu.memory_space<vmem>>, vector<8x32xf32>
    tpu.vector_store %arg14[%c0_21, %c32], %25 {strides = array<i32>} : memref<8x256xf32, #tpu.memory_space<vmem>>, vector<8x32xf32>,
    %27 = vector.extract_strided_slice %6 {offsets = [16, 0], sizes = [8, 32], strides = [1, 1]} : vector<56x32xf32> to vector<8x32xf32>
    %c0_22 = arith.constant 0 : index
    %c64 = arith.constant 64 : index
    %28 = vector.load %arg14[%c0_22, %c64] : memref<8x256xf32, #tpu.memory_space<vmem>>, vector<8x32xf32>
    tpu.vector_store %arg14[%c0_22, %c64], %27 {strides = array<i32>} : memref<8x256xf32, #tpu.memory_space<vmem>>, vector<8x32xf32>,
    %29 = vector.extract_strided_slice %6 {offsets = [24, 0], sizes = [8, 32], strides = [1, 1]} : vector<56x32xf32> to vector<8x32xf32>
    %c0_23 = arith.constant 0 : index
    %c96 = arith.constant 96 : index
    %30 = vector.load %arg14[%c0_23, %c96] : memref<8x256xf32, #tpu.memory_space<vmem>>, vector<8x32xf32>
    tpu.vector_store %arg14[%c0_23, %c96], %29 {strides = array<i32>} : memref<8x256xf32, #tpu.memory_space<vmem>>, vector<8x32xf32>,
    %31 = vector.extract_strided_slice %6 {offsets = [32, 0], sizes = [8, 32], strides = [1, 1]} : vector<56x32xf32> to vector<8x32xf32>
    %c0_24 = arith.constant 0 : index
    %c128 = arith.constant 128 : index
    %32 = vector.load %arg14[%c0_24, %c128] : memref<8x256xf32, #tpu.memory_space<vmem>>, vector<8x32xf32>
    tpu.vector_store %arg14[%c0_24, %c128], %31 {strides = array<i32>} : memref<8x256xf32, #tpu.memory_space<vmem>>, vector<8x32xf32>,
    %33 = vector.extract_strided_slice %6 {offsets = [40, 0], sizes = [8, 32], strides = [1, 1]} : vector<56x32xf32> to vector<8x32xf32>
    %c0_25 = arith.constant 0 : index
    %c160 = arith.constant 160 : index
    %34 = vector.load %arg14[%c0_25, %c160] : memref<8x256xf32, #tpu.memory_space<vmem>>, vector<8x32xf32>
    tpu.vector_store %arg14[%c0_25, %c160], %33 {strides = array<i32>} : memref<8x256xf32, #tpu.memory_space<vmem>>, vector<8x32xf32>,
    %35 = vector.extract_strided_slice %6 {offsets = [48, 0], sizes = [8, 32], strides = [1, 1]} : vector<56x32xf32> to vector<8x32xf32>
    %c0_26 = arith.constant 0 : index
    %c192 = arith.constant 192 : index
    %36 = vector.load %arg14[%c0_26, %c192] : memref<8x256xf32, #tpu.memory_space<vmem>>, vector<8x32xf32>
    tpu.vector_store %arg14[%c0_26, %c192], %35 {strides = array<i32>} : memref<8x256xf32, #tpu.memory_space<vmem>>, vector<8x32xf32>,
    %c0_27 = arith.constant 0 : index
    %c224 = arith.constant 224 : index
    %37 = vector.load %arg14[%c0_27, %c224] : memref<8x256xf32, #tpu.memory_space<vmem>>, vector<8x32xf32>
    tpu.vector_store %arg14[%c0_27, %c224], %22 {strides = array<i32>} : memref<8x256xf32, #tpu.memory_space<vmem>>, vector<8x32xf32>,
    %c0_28 = arith.constant 0 : index
    %c0_29 = arith.constant 0 : index
    %38 = vector.load %arg14[%c0_28, %c0_29] : memref<8x256xf32, #tpu.memory_space<vmem>>, vector<8x256xf32>
    %39 = arith.truncf %38 : vector<8x256xf32> to vector<8x256xbf16>
    %c0_30 = arith.constant 0 : index
    %c0_31 = arith.constant 0 : index
    %40 = vector.load %arg9[%c0_30, %c0_31] : memref<256x256xbf16, #tpu.memory_space<vmem>>, vector<256x256xbf16>
    %cst_32 = arith.constant dense<0.000000e+00> : vector<8x256xf32>
    %41 = tpu.matmul %39, %40, %cst_32 {dimension_numbers = #tpu.dot_dimension_numbers<[1], [0], [0], [1], [0, 0, 1, 1], [], []>} : vector<8x256xbf16>, vector<256x256xbf16>, vector<8x256xf32> -> vector<8x256xf32>
    %c0_33 = arith.constant 0 : index
    %c0_34 = arith.constant 0 : index
    %42 = vector.load %arg10[%c0_33, %c0_34] : memref<1x256xf32, #tpu.memory_space<vmem>>, vector<1x256xf32>
    %43 = vector.broadcast %42 : vector<1x256xf32> to vector<8x256xf32>
    %44 = arith.addf %41, %43 : vector<8x256xf32>
    %cst_35 = arith.constant 0.000000e+00 : f32
    %45 = vector.broadcast %cst_35 : f32 to vector<8x256xf32>
    %46 = arith.maximumf %44, %45 : vector<8x256xf32>
    %47 = arith.truncf %46 : vector<8x256xf32> to vector<8x256xbf16>
    %c0_36 = arith.constant 0 : index
    %c0_37 = arith.constant 0 : index
    %48 = vector.load %arg11[%c0_36, %c0_37] : memref<256x128xbf16, #tpu.memory_space<vmem>>, vector<256x128xbf16>
    %cst_38 = arith.constant dense<0.000000e+00> : vector<8x128xf32>
    %49 = tpu.matmul %47, %48, %cst_38 {dimension_numbers = #tpu.dot_dimension_numbers<[1], [0], [0], [1], [0, 0, 1, 1], [], []>} : vector<8x256xbf16>, vector<256x128xbf16>, vector<8x128xf32> -> vector<8x128xf32>
    %c0_39 = arith.constant 0 : index
    %c0_40 = arith.constant 0 : index
    %50 = vector.load %arg12[%c0_39, %c0_40] : memref<1x128xf32, #tpu.memory_space<vmem>>, vector<1x128xf32>
    %51 = vector.broadcast %50 : vector<1x128xf32> to vector<8x128xf32>
    %52 = arith.addf %49, %51 : vector<8x128xf32>
    %c0_41 = arith.constant 0 : index
    %c0_42 = arith.constant 0 : index
    %53 = vector.load %arg13[%c0_41, %c0_42] : memref<8x128xf32, #tpu.memory_space<vmem>>, vector<8x128xf32>
    tpu.vector_store %arg13[%c0_41, %c0_42], %52 {strides = array<i32>} : memref<8x128xf32, #tpu.memory_space<vmem>>, vector<8x128xf32>,
    return
  }
  func.func @transform_0(%arg0: i32) -> (i32, i32) {
    %c0_i32 = arith.constant 0 : i32
    %c0_i32_0 = arith.constant 0 : i32
    %c0_i32_1 = arith.constant 0 : i32
    return %c0_i32, %c0_i32_0 : i32, i32
  }
  func.func @transform_1(%arg0: i32) -> (i32, i32) {
    %c0_i32 = arith.constant 0 : i32
    %c0_i32_0 = arith.constant 0 : i32
    %c0_i32_1 = arith.constant 0 : i32
    return %c0_i32, %c0_i32_0 : i32, i32
  }
  func.func @transform_2(%arg0: i32) -> (i32, i32) {
    %c0_i32 = arith.constant 0 : i32
    %c0_i32_0 = arith.constant 0 : i32
    %c0_i32_1 = arith.constant 0 : i32
    return %c0_i32, %c0_i32_0 : i32, i32
  }
  func.func @transform_3(%arg0: i32) -> (i32, i32) {
    %c0_i32 = arith.constant 0 : i32
    %c0_i32_0 = arith.constant 0 : i32
    %c0_i32_1 = arith.constant 0 : i32
    return %c0_i32, %c0_i32_0 : i32, i32
  }
  func.func @transform_4(%arg0: i32) -> (i32, i32) {
    %c0_i32 = arith.constant 0 : i32
    %c0_i32_0 = arith.constant 0 : i32
    %c0_i32_1 = arith.constant 0 : i32
    return %c0_i32, %c0_i32_0 : i32, i32
  }
  func.func @transform_5(%arg0: i32) -> (i32, i32) {
    %c0_i32 = arith.constant 0 : i32
    %c0_i32_0 = arith.constant 0 : i32
    %c0_i32_1 = arith.constant 0 : i32
    return %c0_i32, %c0_i32_0 : i32, i32
  }
  func.func @transform_6(%arg0: i32) -> (i32, i32) {
    %c0_i32 = arith.constant 0 : i32
    %c0_i32_0 = arith.constant 0 : i32
    %c0_i32_1 = arith.constant 0 : i32
    return %c0_i32, %c0_i32_0 : i32, i32
  }
  func.func @transform_7(%arg0: i32) -> (i32, i32) {
    %c0_i32 = arith.constant 0 : i32
    %c0_i32_0 = arith.constant 0 : i32
    %c0_i32_1 = arith.constant 0 : i32
    return %c0_i32, %c0_i32_0 : i32, i32
  }
  func.func @transform_8(%arg0: i32) -> (i32, i32) {
    %c0_i32 = arith.constant 0 : i32
    %c0_i32_0 = arith.constant 0 : i32
    %c0_i32_1 = arith.constant 0 : i32
    return %c0_i32, %c0_i32_0 : i32, i32
  }
  func.func @transform_9(%arg0: i32) -> (i32, i32) {
    %c0_i32 = arith.constant 0 : i32
    %c0_i32_0 = arith.constant 0 : i32
    %c0_i32_1 = arith.constant 0 : i32
    return %c0_i32, %c0_i32_0 : i32, i32
  }
  func.func @transform_10(%arg0: i32) -> (i32, i32) {
    %c0_i32 = arith.constant 0 : i32
    %c0_i32_0 = arith.constant 0 : i32
    %c0_i32_1 = arith.constant 0 : i32
    return %c0_i32, %c0_i32_0 : i32, i32
  }
  func.func @transform_11(%arg0: i32) -> (i32, i32) {
    %c0_i32 = arith.constant 0 : i32
    %c0_i32_0 = arith.constant 0 : i32
    %c0_i32_1 = arith.constant 0 : i32
    return %c0_i32, %c0_i32_0 : i32, i32
  }
  func.func @transform_12(%arg0: i32) -> (i32, i32) {
    %c0_i32 = arith.constant 0 : i32
    %c0_i32_0 = arith.constant 0 : i32
    %c0_i32_1 = arith.constant 0 : i32
    return %c0_i32, %c0_i32_0 : i32, i32
  }
}

</mosaic_0001>

<llo_original>
// kernel: parallel_densenet_forward.1
$region0: #{parallel_densenet_forward.1}
  #allocation0 [shape = 'u32[]', space=smem, size = 0x4, offset = 0x4, fixed_abs, tag = 'smem constant byte address 0x4 - core index']
  #allocation1 [shape = 'u32[144,128]{1,0:T(1,128)}', space=vmem, size = 0x12000, scoped, tag = 'internal scratch']
  #allocation2 [shape = 'f32[8,256]{1,0:T(8,128)}', space=vmem, size = 0x2000, scoped, tag = 'scratch operand']
  %s0 = inlined_call_operand.vmem [shape: bf16[896,128], index: 0, kind: input, shape index: {}]
  %s1 = inlined_call_operand.vmem [shape: bf16[128,32], index: 1, kind: input, shape index: {}]
  %s2 = inlined_call_operand.vmem [shape: f32[56,896], index: 2, kind: input, shape index: {}]
  %s3 = inlined_call_operand.vmem [shape: f32[8,1], index: 3, kind: input, shape index: {}]
  %s4 = inlined_call_operand.vmem [shape: f32[1,64], index: 4, kind: input, shape index: {}]
  %s5 = inlined_call_operand.vmem [shape: f32[1,64], index: 5, kind: input, shape index: {}]
  %s6 = inlined_call_operand.vmem [shape: bf16[64,32], index: 6, kind: input, shape index: {}]
  %s7 = inlined_call_operand.vmem [shape: f32[1,32], index: 7, kind: input, shape index: {}]
  %s8 = inlined_call_operand.vmem [shape: bf16[256,256], index: 8, kind: input, shape index: {}]
  %s9 = inlined_call_operand.vmem [shape: f32[1,256], index: 9, kind: input, shape index: {}]
  %s10 = inlined_call_operand.vmem [shape: bf16[256,128], index: 10, kind: input, shape index: {}]
  %s11 = inlined_call_operand.vmem [shape: f32[1,128], index: 11, kind: input, shape index: {}]
  %s12 = inlined_call_operand.vmem [shape: f32[8,128], index: 12, kind: output, shape index: {}]
  %s13 = sld [smem:[#allocation0]]
  $region58: #{parallel_densenet_forward.1} parent=0
    _
  %s15 = ssub.s32 1, %s13
  %s16 = scalar_select 0, %s15, %s13
  // Predicated region
  $region2: #{parallel_densenet_forward.1} parent=0 // pred_check
    _
  $region3: #{parallel_densenet_forward.1} parent=0 // pred_check_branch
    %18 = sbr.rel (0) target = $region5
  $region4: #{parallel_densenet_forward.1} parent=0 // pred_region
    _
  $region5: #{parallel_densenet_forward.1} parent=0 // pred_fallthru
    _
  // Predicated region
  $region6: #{parallel_densenet_forward.1} parent=0 // pred_check
    _
  $region7: #{parallel_densenet_forward.1} parent=0 // pred_check_branch
    %20 = sbr.rel (0) target = $region9
  $region8: #{parallel_densenet_forward.1} parent=0 // pred_region
    _
  $region9: #{parallel_densenet_forward.1} parent=0 // pred_fallthru
    _
  // Predicated region
  $region10: #{parallel_densenet_forward.1} parent=0 // pred_check
    _
  $region11: #{parallel_densenet_forward.1} parent=0 // pred_check_branch
    %22 = sbr.rel (0) target = $region13
  $region12: #{parallel_densenet_forward.1} parent=0 // pred_region
    _
  $region13: #{parallel_densenet_forward.1} parent=0 // pred_fallthru
    _
  // Predicated region
  $region14: #{parallel_densenet_forward.1} parent=0 // pred_check
    _
  $region15: #{parallel_densenet_forward.1} parent=0 // pred_check_branch
    %24 = sbr.rel (0) target = $region17
  $region16: #{parallel_densenet_forward.1} parent=0 // pred_region
    _
  $region17: #{parallel_densenet_forward.1} parent=0 // pred_fallthru
    _
  // Predicated region
  $region18: #{parallel_densenet_forward.1} parent=0 // pred_check
    _
  $region19: #{parallel_densenet_forward.1} parent=0 // pred_check_branch
    %26 = sbr.rel (0) target = $region21
  $region20: #{parallel_densenet_forward.1} parent=0 // pred_region
    _
  $region21: #{parallel_densenet_forward.1} parent=0 // pred_fallthru
    _
  // Predicated region
  $region22: #{parallel_densenet_forward.1} parent=0 // pred_check
    _
  $region23: #{parallel_densenet_forward.1} parent=0 // pred_check_branch
    %28 = sbr.rel (0) target = $region25
  $region24: #{parallel_densenet_forward.1} parent=0 // pred_region
    _
  $region25: #{parallel_densenet_forward.1} parent=0 // pred_fallthru
    _
  // Predicated region
  $region26: #{parallel_densenet_forward.1} parent=0 // pred_check
    _
  $region27: #{parallel_densenet_forward.1} parent=0 // pred_check_branch
    %30 = sbr.rel (0) target = $region29
  $region28: #{parallel_densenet_forward.1} parent=0 // pred_region
    _
  $region29: #{parallel_densenet_forward.1} parent=0 // pred_fallthru
    _
  // Predicated region
  $region30: #{parallel_densenet_forward.1} parent=0 // pred_check
    _
  $region31: #{parallel_densenet_forward.1} parent=0 // pred_check_branch
    %32 = sbr.rel (0) target = $region33
  $region32: #{parallel_densenet_forward.1} parent=0 // pred_region
    _
  $region33: #{parallel_densenet_forward.1} parent=0 // pred_fallthru
    _
  // Predicated region
  $region34: #{parallel_densenet_forward.1} parent=0 // pred_check
    _
  $region35: #{parallel_densenet_forward.1} parent=0 // pred_check_branch
    %34 = sbr.rel (0) target = $region37
  $region36: #{parallel_densenet_forward.1} parent=0 // pred_region
    _
  $region37: #{parallel_densenet_forward.1} parent=0 // pred_fallthru
    _
  // Predicated region
  $region38: #{parallel_densenet_forward.1} parent=0 // pred_check
    _
  $region39: #{parallel_densenet_forward.1} parent=0 // pred_check_branch
    %36 = sbr.rel (0) target = $region41
  $region40: #{parallel_densenet_forward.1} parent=0 // pred_region
    _
  $region41: #{parallel_densenet_forward.1} parent=0 // pred_fallthru
    _
  // Predicated region
  $region42: #{parallel_densenet_forward.1} parent=0 // pred_check
    _
  $region43: #{parallel_densenet_forward.1} parent=0 // pred_check_branch
    %38 = sbr.rel (0) target = $region45
  $region44: #{parallel_densenet_forward.1} parent=0 // pred_region
    _
  $region45: #{parallel_densenet_forward.1} parent=0 // pred_fallthru
    _
  // Predicated region
  $region46: #{parallel_densenet_forward.1} parent=0 // pred_check
    _
  $region47: #{parallel_densenet_forward.1} parent=0 // pred_check_branch
    %40 = sbr.rel (0) target = $region49
  $region48: #{parallel_densenet_forward.1} parent=0 // pred_region
    _
  $region49: #{parallel_densenet_forward.1} parent=0 // pred_fallthru
    _
  %v42 = vld [vmem:[%s0] sm:$0xf]
  %v43 = vld [vmem:[%s0 + $0x4] sm:$0xf]
  %v44 = vld [vmem:[%s0 + $0x8] sm:$0xf]
  %v45 = vld [vmem:[%s0 + $0xc] sm:$0xf]
  %v46 = vld [vmem:[%s0 + $0x10] sm:$0xf]
  %v47 = vld [vmem:[%s0 + $0x14] sm:$0xf]
  %v48 = vld [vmem:[%s0 + $0x18] sm:$0xf]
  %v49 = vld [vmem:[%s0 + $0x1c] sm:$0xf]
  %v50 = vld [vmem:[%s0 + $0x20] sm:$0xf]
  %v51 = vld [vmem:[%s0 + $0x24] sm:$0xf]
  %v52 = vld [vmem:[%s0 + $0x28] sm:$0xf]
  %v53 = vld [vmem:[%s0 + $0x2c] sm:$0xf]
  %v54 = vld [vmem:[%s0 + $0x30] sm:$0xf]
  %v55 = vld [vmem:[%s0 + $0x34] sm:$0xf]
  %v56 = vld [vmem:[%s0 + $0x38] sm:$0xf]
  %v57 = vld [vmem:[%s0 + $0x3c] sm:$0xf]
  %v58 = vld [vmem:[%s0 + $0x40] sm:$0xf]
  %v59 = vld [vmem:[%s0 + $0x44] sm:$0xf]
  %v60 = vld [vmem:[%s0 + $0x48] sm:$0xf]
  %v61 = vld [vmem:[%s0 + $0x4c] sm:$0xf]
  %v62 = vld [vmem:[%s0 + $0x50] sm:$0xf]
  %v63 = vld [vmem:[%s0 + $0x54] sm:$0xf]
  %v64 = vld [vmem:[%s0 + $0x58] sm:$0xf]
  %v65 = vld [vmem:[%s0 + $0x5c] sm:$0xf]
  %v66 = vld [vmem:[%s0 + $0x60] sm:$0xf]
  %v67 = vld [vmem:[%s0 + $0x64] sm:$0xf]
  %v68 = vld [vmem:[%s0 + $0x68] sm:$0xf]
  %v69 = vld [vmem:[%s0 + $0x6c] sm:$0xf]
  %v70 = vld [vmem:[%s0 + $0x70] sm:$0xf]
  %v71 = vld [vmem:[%s0 + $0x74] sm:$0xf]
  %v72 = vld [vmem:[%s0 + $0x78] sm:$0xf]
  %v73 = vld [vmem:[%s0 + $0x7c] sm:$0xf]
  %v74 = vld [vmem:[%s0 + $0x80] sm:$0xf]
  %v75 = vld [vmem:[%s0 + $0x84] sm:$0xf]
  %v76 = vld [vmem:[%s0 + $0x88] sm:$0xf]
  %v77 = vld [vmem:[%s0 + $0x8c] sm:$0xf]
  %v78 = vld [vmem:[%s0 + $0x90] sm:$0xf]
  %v79 = vld [vmem:[%s0 + $0x94] sm:$0xf]
  %v80 = vld [vmem:[%s0 + $0x98] sm:$0xf]
  %v81 = vld [vmem:[%s0 + $0x9c] sm:$0xf]
  %v82 = vld [vmem:[%s0 + $0xa0] sm:$0xf]
  %v83 = vld [vmem:[%s0 + $0xa4] sm:$0xf]
  %v84 = vld [vmem:[%s0 + $0xa8] sm:$0xf]
  %v85 = vld [vmem:[%s0 + $0xac] sm:$0xf]
  %v86 = vld [vmem:[%s0 + $0xb0] sm:$0xf]
  %v87 = vld [vmem:[%s0 + $0xb4] sm:$0xf]
  %v88 = vld [vmem:[%s0 + $0xb8] sm:$0xf]
  %v89 = vld [vmem:[%s0 + $0xbc] sm:$0xf]
  %v90 = vld [vmem:[%s0 + $0xc0] sm:$0xf]
  %v91 = vld [vmem:[%s0 + $0xc4] sm:$0xf]
  %v92 = vld [vmem:[%s0 + $0xc8] sm:$0xf]
  %v93 = vld [vmem:[%s0 + $0xcc] sm:$0xf]
  %v94 = vld [vmem:[%s0 + $0xd0] sm:$0xf]
  %v95 = vld [vmem:[%s0 + $0xd4] sm:$0xf]
  %v96 = vld [vmem:[%s0 + $0xd8] sm:$0xf]
  %v97 = vld [vmem:[%s0 + $0xdc] sm:$0xf]
  %v98 = vld [vmem:[%s0 + $0xe0] sm:$0xf]
  %v99 = vld [vmem:[%s0 + $0xe4] sm:$0xf]
  %v100 = vld [vmem:[%s0 + $0xe8] sm:$0xf]
  %v101 = vld [vmem:[%s0 + $0xec] sm:$0xf]
  %v102 = vld [vmem:[%s0 + $0xf0] sm:$0xf]
  %v103 = vld [vmem:[%s0 + $0xf4] sm:$0xf]
  %v104 = vld [vmem:[%s0 + $0xf8] sm:$0xf]
  %v105 = vld [vmem:[%s0 + $0xfc] sm:$0xf]
  %v106 = vld [vmem:[%s0 + $0x100] sm:$0xf]
  %v107 = vld [vmem:[%s0 + $0x104] sm:$0xf]
  %v108 = vld [vmem:[%s0 + $0x108] sm:$0xf]
  %v109 = vld [vmem:[%s0 + $0x10c] sm:$0xf]
  %v110 = vld [vmem:[%s0 + $0x110] sm:$0xf]
  %v111 = vld [vmem:[%s0 + $0x114] sm:$0xf]
  %v112 = vld [vmem:[%s0 + $0x118] sm:$0xf]
  %v113 = vld [vmem:[%s0 + $0x11c] sm:$0xf]
  %v114 = vld [vmem:[%s0 + $0x120] sm:$0xf]
  %v115 = vld [vmem:[%s0 + $0x124] sm:$0xf]
  %v116 = vld [vmem:[%s0 + $0x128] sm:$0xf]
  %v117 = vld [vmem:[%s0 + $0x12c] sm:$0xf]
  %v118 = vld [vmem:[%s0 + $0x130] sm:$0xf]
  %v119 = vld [vmem:[%s0 + $0x134] sm:$0xf]
  %v120 = vld [vmem:[%s0 + $0x138] sm:$0xf]
  %v121 = vld [vmem:[%s0 + $0x13c] sm:$0xf]
  %v122 = vld [vmem:[%s0 + $0x140] sm:$0xf]
  %v123 = vld [vmem:[%s0 + $0x144] sm:$0xf]
  %v124 = vld [vmem:[%s0 + $0x148] sm:$0xf]
  %v125 = vld [vmem:[%s0 + $0x14c] sm:$0xf]
  %v126 = vld [vmem:[%s0 + $0x150] sm:$0xf]
  %v127 = vld [vmem:[%s0 + $0x154] sm:$0xf]
  %v128 = vld [vmem:[%s0 + $0x158] sm:$0xf]
  %v129 = vld [vmem:[%s0 + $0x15c] sm:$0xf]
  %v130 = vld [vmem:[%s0 + $0x160] sm:$0xf]
  %v131 = vld [vmem:[%s0 + $0x164] sm:$0xf]
  %v132 = vld [vmem:[%s0 + $0x168] sm:$0xf]
  %v133 = vld [vmem:[%s0 + $0x16c] sm:$0xf]
  %v134 = vld [vmem:[%s0 + $0x170] sm:$0xf]
  %v135 = vld [vmem:[%s0 + $0x174] sm:$0xf]
  %v136 = vld [vmem:[%s0 + $0x178] sm:$0xf]
  %v137 = vld [vmem:[%s0 + $0x17c] sm:$0xf]
  %v138 = vld [vmem:[%s0 + $0x180] sm:$0xf]
  %v139 = vld [vmem:[%s0 + $0x184] sm:$0xf]
  %v140 = vld [vmem:[%s0 + $0x188] sm:$0xf]
  %v141 = vld [vmem:[%s0 + $0x18c] sm:$0xf]
  %v142 = vld [vmem:[%s0 + $0x190] sm:$0xf]
  %v143 = vld [vmem:[%s0 + $0x194] sm:$0xf]
  %v144 = vld [vmem:[%s0 + $0x198] sm:$0xf]
  %v145 = vld [vmem:[%s0 + $0x19c] sm:$0xf]
  %v146 = vld [vmem:[%s0 + $0x1a0] sm:$0xf]
  %v147 = vld [vmem:[%s0 + $0x1a4] sm:$0xf]
  %v148 = vld [vmem:[%s0 + $0x1a8] sm:$0xf]
  %v149 = vld [vmem:[%s0 + $0x1ac] sm:$0xf]
  %v150 = vld [vmem:[%s0 + $0x1b0] sm:$0xf]
  %v151 = vld [vmem:[%s0 + $0x1b4] sm:$0xf]
  %v152 = vld [vmem:[%s0 + $0x1b8] sm:$0xf]
  %v153 = vld [vmem:[%s0 + $0x1bc] sm:$0xf]
  %v154 = vld [vmem:[%s1] sm:$0xf]
  %v155 = vld [vmem:[%s1 + $0x4] sm:$0xf]
  %v156 = vld [vmem:[%s1 + $0x8] sm:$0xf]
  %v157 = vld [vmem:[%s1 + $0xc] sm:$0xf]
  %v158 = vld [vmem:[%s1 + $0x10] sm:$0xf]
  %v159 = vld [vmem:[%s1 + $0x14] sm:$0xf]
  %v160 = vld [vmem:[%s1 + $0x18] sm:$0xf]
  %v161 = vld [vmem:[%s1 + $0x1c] sm:$0xf]
  %v162 = vld [vmem:[%s1 + $0x20] sm:$0xf]
  %v163 = vld [vmem:[%s1 + $0x24] sm:$0xf]
  %v164 = vld [vmem:[%s1 + $0x28] sm:$0xf]
  %v165 = vld [vmem:[%s1 + $0x2c] sm:$0xf]
  %v166 = vld [vmem:[%s1 + $0x30] sm:$0xf]
  %v167 = vld [vmem:[%s1 + $0x34] sm:$0xf]
  %v168 = vld [vmem:[%s1 + $0x38] sm:$0xf]
  %v169 = vld [vmem:[%s1 + $0x3c] sm:$0xf]
  %v282 = vunpack.c.l.b16 %v42
  %v283 = vunpack.c.l.b16 %v43
  %v284 = vunpack.c.l.b16 %v44
  %v285 = vunpack.c.l.b16 %v45
  %v286 = vunpack.c.l.b16 %v46
  %v287 = vunpack.c.l.b16 %v47
  %v288 = vunpack.c.l.b16 %v48
  %v289 = vunpack.c.l.b16 %v49
  %v290 = vunpack.c.l.b16 %v50
  %v291 = vunpack.c.l.b16 %v51
  %v292 = vunpack.c.l.b16 %v52
  %v293 = vunpack.c.l.b16 %v53
  %v294 = vunpack.c.l.b16 %v54
  %v295 = vunpack.c.l.b16 %v55
  %v296 = vunpack.c.l.b16 %v56
  %v297 = vunpack.c.l.b16 %v57
  %v298 = vunpack.c.l.b16 %v58
  %v299 = vunpack.c.l.b16 %v59
  %v300 = vunpack.c.l.b16 %v60
  %v301 = vunpack.c.l.b16 %v61
  %v302 = vunpack.c.l.b16 %v62
  %v303 = vunpack.c.l.b16 %v63
  %v304 = vunpack.c.l.b16 %v64
  %v305 = vunpack.c.l.b16 %v65
  %v306 = vunpack.c.l.b16 %v66
  %v307 = vunpack.c.l.b16 %v67
  %v308 = vunpack.c.l.b16 %v68
  %v309 = vunpack.c.l.b16 %v69
  %v310 = vunpack.c.l.b16 %v70
  %v311 = vunpack.c.l.b16 %v71
  %v312 = vunpack.c.l.b16 %v72
  %v313 = vunpack.c.l.b16 %v73
  %v314 = vunpack.c.l.b16 %v74
  %v315 = vunpack.c.l.b16 %v75
  %v316 = vunpack.c.l.b16 %v76
  %v317 = vunpack.c.l.b16 %v77
  %v318 = vunpack.c.l.b16 %v78
  %v319 = vunpack.c.l.b16 %v79
  %v320 = vunpack.c.l.b16 %v80
  %v321 = vunpack.c.l.b16 %v81
  %v322 = vunpack.c.l.b16 %v82
  %v323 = vunpack.c.l.b16 %v83
  %v324 = vunpack.c.l.b16 %v84
  %v325 = vunpack.c.l.b16 %v85
  %v326 = vunpack.c.l.b16 %v86
  %v327 = vunpack.c.l.b16 %v87
  %v328 = vunpack.c.l.b16 %v88
  %v329 = vunpack.c.l.b16 %v89
  %v330 = vunpack.c.l.b16 %v90
  %v331 = vunpack.c.l.b16 %v91
  %v332 = vunpack.c.l.b16 %v92
  %v333 = vunpack.c.l.b16 %v93
  %v334 = vunpack.c.l.b16 %v94
  %v335 = vunpack.c.l.b16 %v95
  %v336 = vunpack.c.l.b16 %v96
  %v337 = vunpack.c.l.b16 %v97
  %v338 = vunpack.c.l.b16 %v98
  %v339 = vunpack.c.l.b16 %v99
  %v340 = vunpack.c.l.b16 %v100
  %v341 = vunpack.c.l.b16 %v101
  %v342 = vunpack.c.l.b16 %v102
  %v343 = vunpack.c.l.b16 %v103
  %v344 = vunpack.c.l.b16 %v104
  %v345 = vunpack.c.l.b16 %v105
  %v346 = vunpack.c.l.b16 %v106
  %v347 = vunpack.c.l.b16 %v107
  %v348 = vunpack.c.l.b16 %v108
  %v349 = vunpack.c.l.b16 %v109
  %v350 = vunpack.c.l.b16 %v110
  %v351 = vunpack.c.l.b16 %v111
  %v352 = vunpack.c.l.b16 %v112
  %v353 = vunpack.c.l.b16 %v113
  %v354 = vunpack.c.l.b16 %v114
  %v355 = vunpack.c.l.b16 %v115
  %v356 = vunpack.c.l.b16 %v116
  %v357 = vunpack.c.l.b16 %v117
  %v358 = vunpack.c.l.b16 %v118
  %v359 = vunpack.c.l.b16 %v119
  %v360 = vunpack.c.l.b16 %v120
  %v361 = vunpack.c.l.b16 %v121
  %v362 = vunpack.c.l.b16 %v122
  %v363 = vunpack.c.l.b16 %v123
  %v364 = vunpack.c.l.b16 %v124
  %v365 = vunpack.c.l.b16 %v125
  %v366 = vunpack.c.l.b16 %v126
  %v367 = vunpack.c.l.b16 %v127
  %v368 = vunpack.c.l.b16 %v128
  %v369 = vunpack.c.l.b16 %v129
  %v370 = vunpack.c.l.b16 %v130
  %v371 = vunpack.c.l.b16 %v131
  %v372 = vunpack.c.l.b16 %v132
  %v373 = vunpack.c.l.b16 %v133
  %v374 = vunpack.c.l.b16 %v134
  %v375 = vunpack.c.l.b16 %v135
  %v376 = vunpack.c.l.b16 %v136
  %v377 = vunpack.c.l.b16 %v137
  %v378 = vunpack.c.l.b16 %v138
  %v379 = vunpack.c.l.b16 %v139
  %v380 = vunpack.c.l.b16 %v140
  %v381 = vunpack.c.l.b16 %v141
  %v382 = vunpack.c.l.b16 %v142
  %v383 = vunpack.c.l.b16 %v143
  %v384 = vunpack.c.l.b16 %v144
  %v385 = vunpack.c.l.b16 %v145
  %v386 = vunpack.c.l.b16 %v146
  %v387 = vunpack.c.l.b16 %v147
  %v388 = vunpack.c.l.b16 %v148
  %v389 = vunpack.c.l.b16 %v149
  %v390 = vunpack.c.l.b16 %v150
  %v391 = vunpack.c.l.b16 %v151
  %v392 = vunpack.c.l.b16 %v152
  %v393 = vunpack.c.l.b16 %v153
  %v394 = vpack.c.b16 %v283, %v282
  %v395 = vpack.c.b16 %v285, %v284
  %v396 = vpack.c.b16 %v287, %v286
  %v397 = vpack.c.b16 %v289, %v288
  %v398 = vpack.c.b16 %v291, %v290
  %v399 = vpack.c.b16 %v293, %v292
  %v400 = vpack.c.b16 %v295, %v294
  %v401 = vpack.c.b16 %v297, %v296
  %v402 = vpack.c.b16 %v299, %v298
  %v403 = vpack.c.b16 %v301, %v300
  %v404 = vpack.c.b16 %v303, %v302
  %v405 = vpack.c.b16 %v305, %v304
  %v406 = vpack.c.b16 %v307, %v306
  %v407 = vpack.c.b16 %v309, %v308
  %v408 = vpack.c.b16 %v311, %v310
  %v409 = vpack.c.b16 %v313, %v312
  %v410 = vpack.c.b16 %v315, %v314
  %v411 = vpack.c.b16 %v317, %v316
  %v412 = vpack.c.b16 %v319, %v318
  %v413 = vpack.c.b16 %v321, %v320
  %v414 = vpack.c.b16 %v323, %v322
  %v415 = vpack.c.b16 %v325, %v324
  %v416 = vpack.c.b16 %v327, %v326
  %v417 = vpack.c.b16 %v329, %v328
  %v418 = vpack.c.b16 %v331, %v330
  %v419 = vpack.c.b16 %v333, %v332
  %v420 = vpack.c.b16 %v335, %v334
  %v421 = vpack.c.b16 %v337, %v336
  %v422 = vpack.c.b16 %v339, %v338
  %v423 = vpack.c.b16 %v341, %v340
  %v424 = vpack.c.b16 %v343, %v342
  %v425 = vpack.c.b16 %v345, %v344
  %v426 = vpack.c.b16 %v347, %v346
  %v427 = vpack.c.b16 %v349, %v348
  %v428 = vpack.c.b16 %v351, %v350
  %v429 = vpack.c.b16 %v353, %v352
  %v430 = vpack.c.b16 %v355, %v354
  %v431 = vpack.c.b16 %v357, %v356
  %v432 = vpack.c.b16 %v359, %v358
  %v433 = vpack.c.b16 %v361, %v360
  %v434 = vpack.c.b16 %v363, %v362
  %v435 = vpack.c.b16 %v365, %v364
  %v436 = vpack.c.b16 %v367, %v366
  %v437 = vpack.c.b16 %v369, %v368
  %v438 = vpack.c.b16 %v371, %v370
  %v439 = vpack.c.b16 %v373, %v372
  %v440 = vpack.c.b16 %v375, %v374
  %v441 = vpack.c.b16 %v377, %v376
  %v442 = vpack.c.b16 %v379, %v378
  %v443 = vpack.c.b16 %v381, %v380
  %v444 = vpack.c.b16 %v383, %v382
  %v445 = vpack.c.b16 %v385, %v384
  %v446 = vpack.c.b16 %v387, %v386
  %v447 = vpack.c.b16 %v389, %v388
  %v448 = vpack.c.b16 %v391, %v390
  %v449 = vpack.c.b16 %v393, %v392
  %v522 = vunpack.c.l.b16 %v154
  %v523 = vunpack.c.l.b16 %v155
  %v524 = vunpack.c.l.b16 %v156
  %v525 = vunpack.c.l.b16 %v157
  %v526 = vunpack.c.l.b16 %v158
  %v527 = vunpack.c.l.b16 %v159
  %v528 = vunpack.c.l.b16 %v160
  %v529 = vunpack.c.l.b16 %v161
  %v530 = vunpack.c.l.b16 %v162
  %v531 = vunpack.c.l.b16 %v163
  %v532 = vunpack.c.l.b16 %v164
  %v533 = vunpack.c.l.b16 %v165
  %v534 = vunpack.c.l.b16 %v166
  %v535 = vunpack.c.l.b16 %v167
  %v536 = vunpack.c.l.b16 %v168
  %v537 = vunpack.c.l.b16 %v169
  %v538 = vpack.c.b16 %v523, %v522
  %v539 = vpack.c.b16 %v525, %v524
  %v540 = vpack.c.b16 %v527, %v526
  %v541 = vpack.c.b16 %v529, %v528
  %v542 = vpack.c.b16 %v531, %v530
  %v543 = vpack.c.b16 %v533, %v532
  %v544 = vpack.c.b16 %v535, %v534
  %v545 = vpack.c.b16 %v537, %v536
  %554 = vmatprep.subr.bf16.mxu0 0
  %555 = vmatpush1.bf16.msra.mxu0 %v538
  %556 = vmatprep.subr.bf16.mxu0 0
  %557 = vmatpush1.bf16.msra.mxu0 %v539
  %558 = vmatprep.subr.bf16.mxu0 0
  %559 = vmatpush1.bf16.msra.mxu0 %v540
  %560 = vmatprep.subr.bf16.mxu0 0
  %561 = vmatpush1.bf16.msra.mxu0 %v541
  %562 = vmatprep.subr.bf16.mxu0 0
  %563 = vmatpush1.bf16.msra.mxu0 %v542
  %564 = vmatprep.subr.bf16.mxu0 0
  %565 = vmatpush1.bf16.msra.mxu0 %v543
  %566 = vmatprep.subr.bf16.mxu0 0
  %567 = vmatpush1.bf16.msra.mxu0 %v544
  %568 = vmatprep.subr.bf16.mxu0 0
  %569 = vmatpush1.bf16.msra.mxu0 %v545
  %570 = vmatprep.subr.bf16.mxu0 0
  %571 = vmatpush1.bf16.msra.mxu0 0
  %572 = vmatprep.subr.bf16.mxu0 0
  %573 = vmatpush1.bf16.msra.mxu0 0
  %574 = vmatprep.subr.bf16.mxu0 0
  %575 = vmatpush1.bf16.msra.mxu0 0
  %576 = vmatprep.subr.bf16.mxu0 0
  %577 = vmatpush1.bf16.msra.mxu0 0
  %578 = vmatprep.subr.bf16.mxu0 0
  %579 = vmatpush1.bf16.msra.mxu0 0
  %580 = vmatprep.subr.bf16.mxu0 0
  %581 = vmatpush1.bf16.msra.mxu0 0
  %582 = vmatprep.subr.bf16.mxu0 0
  %583 = vmatpush1.bf16.msra.mxu0 0
  %584 = vmatprep.subr.bf16.mxu0 0
  %585 = vmatpush1.bf16.msra.mxu0 0
  %586 = vmatprep.mubr.bf16.mxu0 0
  %587 = vmatmul.mubr.bf16.gmra.mrb[0].mxu0 %v394
  %v588 = vpop.f32.mrb[0].mxu0
  %v589 = vadd.f32 0.0, %v588
  %v590 = vpop.f32.mrb[0].mxu0
  %v591 = vpop.f32.mrb[0].mxu0
  %v592 = vadd.f32 0.0, %v591
  %v593 = vpop.f32.mrb[0].mxu0
  %594 = vmatprep.mubr.bf16.mxu0 0
  %595 = vmatmul.mubr.bf16.gmra.mrb[0].mxu0 %v395
  %v596 = vpop.f32.mrb[0].mxu0
  %v597 = vadd.f32 0.0, %v596
  %v598 = vpop.f32.mrb[0].mxu0
  %v599 = vpop.f32.mrb[0].mxu0
  %v600 = vadd.f32 0.0, %v599
  %v601 = vpop.f32.mrb[0].mxu0
  %602 = vmatprep.mubr.bf16.mxu0 0
  %603 = vmatmul.mubr.bf16.gmra.mrb[0].mxu0 %v396
  %v604 = vpop.f32.mrb[0].mxu0
  %v605 = vadd.f32 0.0, %v604
  %v606 = vpop.f32.mrb[0].mxu0
  %v607 = vpop.f32.mrb[0].mxu0
  %v608 = vadd.f32 0.0, %v607
  %v609 = vpop.f32.mrb[0].mxu0
  %610 = vmatprep.mubr.bf16.mxu0 0
  %611 = vmatmul.mubr.bf16.gmra.mrb[0].mxu0 %v397
  %v612 = vpop.f32.mrb[0].mxu0
  %v613 = vadd.f32 0.0, %v612
  %v614 = vpop.f32.mrb[0].mxu0
  %v615 = vpop.f32.mrb[0].mxu0
  %v616 = vadd.f32 0.0, %v615
  %v617 = vpop.f32.mrb[0].mxu0
  %618 = vmatprep.mubr.bf16.mxu0 0
  %619 = vmatmul.mubr.bf16.gmra.mrb[0].mxu0 %v398
  %v620 = vpop.f32.mrb[0].mxu0
  %v621 = vadd.f32 0.0, %v620
  %v622 = vpop.f32.mrb[0].mxu0
  %v623 = vpop.f32.mrb[0].mxu0
  %v624 = vadd.f32 0.0, %v623
  %v625 = vpop.f32.mrb[0].mxu0
  %626 = vmatprep.mubr.bf16.mxu0 0
  %627 = vmatmul.mubr.bf16.gmra.mrb[0].mxu0 %v399
  %v628 = vpop.f32.mrb[0].mxu0
  %v629 = vadd.f32 0.0, %v628
  %v630 = vpop.f32.mrb[0].mxu0
  %v631 = vpop.f32.mrb[0].mxu0
  %v632 = vadd.f32 0.0, %v631
  %v633 = vpop.f32.mrb[0].mxu0
  %634 = vmatprep.mubr.bf16.mxu0 0
  %635 = vmatmul.mubr.bf16.gmra.mrb[0].mxu0 %v400
  %v636 = vpop.f32.mrb[0].mxu0
  %v637 = vadd.f32 0.0, %v636
  %v638 = vpop.f32.mrb[0].mxu0
  %v639 = vpop.f32.mrb[0].mxu0
  %v640 = vadd.f32 0.0, %v639
  %v641 = vpop.f32.mrb[0].mxu0
  %642 = vmatprep.mubr.bf16.mxu0 0
  %643 = vmatmul.mubr.bf16.gmra.mrb[0].mxu0 %v401
  %v644 = vpop.f32.mrb[0].mxu0
  %v645 = vadd.f32 0.0, %v644
  %v646 = vpop.f32.mrb[0].mxu0
  %v647 = vpop.f32.mrb[0].mxu0
  %v648 = vadd.f32 0.0, %v647
  %v649 = vpop.f32.mrb[0].mxu0
  %650 = vmatprep.mubr.bf16.mxu0 0
  %651 = vmatmul.mubr.bf16.gmra.mrb[0].mxu0 %v402
  %v652 = vpop.f32.mrb[0].mxu0
  %v653 = vadd.f32 0.0, %v652
  %v654 = vpop.f32.mrb[0].mxu0
  %v655 = vpop.f32.mrb[0].mxu0
  %v656 = vadd.f32 0.0, %v655
  %v657 = vpop.f32.mrb[0].mxu0
  %658 = vmatprep.mubr.bf16.mxu0 0
  %659 = vmatmul.mubr.bf16.gmra.mrb[0].mxu0 %v403
  %v660 = vpop.f32.mrb[0].mxu0
  %v661 = vadd.f32 0.0, %v660
  %v662 = vpop.f32.mrb[0].mxu0
  %v663 = vpop.f32.mrb[0].mxu0
  %v664 = vadd.f32 0.0, %v663
  %v665 = vpop.f32.mrb[0].mxu0
  %666 = vmatprep.mubr.bf16.mxu0 0
  %667 = vmatmul.mubr.bf16.gmra.mrb[0].mxu0 %v404
  %v668 = vpop.f32.mrb[0].mxu0
  %v669 = vadd.f32 0.0, %v668
  %v670 = vpop.f32.mrb[0].mxu0
  %v671 = vpop.f32.mrb[0].mxu0
  %v672 = vadd.f32 0.0, %v671
  %v673 = vpop.f32.mrb[0].mxu0
  %674 = vmatprep.mubr.bf16.mxu0 0
  %675 = vmatmul.mubr.bf16.gmra.mrb[0].mxu0 %v405
  %v676 = vpop.f32.mrb[0].mxu0
  %v677 = vadd.f32 0.0, %v676
  %v678 = vpop.f32.mrb[0].mxu0
  %v679 = vpop.f32.mrb[0].mxu0
  %v680 = vadd.f32 0.0, %v679
  %v681 = vpop.f32.mrb[0].mxu0
  %682 = vmatprep.mubr.bf16.mxu0 0
  %683 = vmatmul.mubr.bf16.gmra.mrb[0].mxu0 %v406
  %v684 = vpop.f32.mrb[0].mxu0
  %v685 = vadd.f32 0.0, %v684
  %v686 = vpop.f32.mrb[0].mxu0
  %v687 = vpop.f32.mrb[0].mxu0
  %v688 = vadd.f32 0.0, %v687
  %v689 = vpop.f32.mrb[0].mxu0
  %690 = vmatprep.mubr.bf16.mxu0 0
  %691 = vmatmul.mubr.bf16.gmra.mrb[0].mxu0 %v407
  %v692 = vpop.f32.mrb[0].mxu0
  %v693 = vadd.f32 0.0, %v692
  %v694 = vpop.f32.mrb[0].mxu0
  %v695 = vpop.f32.mrb[0].mxu0
  %v696 = vadd.f32 0.0, %v695
  %v697 = vpop.f32.mrb[0].mxu0
  %698 = vmatprep.mubr.bf16.mxu0 0
  %699 = vmatmul.mubr.bf16.gmra.mrb[0].mxu0 %v408
  %v700 = vpop.f32.mrb[0].mxu0
  %v701 = vadd.f32 0.0, %v700
  %v702 = vpop.f32.mrb[0].mxu0
  %v703 = vpop.f32.mrb[0].mxu0
  %v704 = vadd.f32 0.0, %v703
  %v705 = vpop.f32.mrb[0].mxu0
  %706 = vmatprep.mubr.bf16.mxu0 0
  %707 = vmatmul.mubr.bf16.gmra.mrb[0].mxu0 %v409
  %v708 = vpop.f32.mrb[0].mxu0
  %v709 = vadd.f32 0.0, %v708
  %v710 = vpop.f32.mrb[0].mxu0
  %v711 = vpop.f32.mrb[0].mxu0
  %v712 = vadd.f32 0.0, %v711
  %v713 = vpop.f32.mrb[0].mxu0
  %714 = vmatprep.mubr.bf16.mxu0 0
  %715 = vmatmul.mubr.bf16.gmra.mrb[0].mxu0 %v410
  %v716 = vpop.f32.mrb[0].mxu0
  %v717 = vadd.f32 0.0, %v716
  %v718 = vpop.f32.mrb[0].mxu0
  %v719 = vpop.f32.mrb[0].mxu0
  %v720 = vadd.f32 0.0, %v719
  %v721 = vpop.f32.mrb[0].mxu0
  %722 = vmatprep.mubr.bf16.mxu0 0
  %723 = vmatmul.mubr.bf16.gmra.mrb[0].mxu0 %v411
  %v724 = vpop.f32.mrb[0].mxu0
  %v725 = vadd.f32 0.0, %v724
  %v726 = vpop.f32.mrb[0].mxu0
  %v727 = vpop.f32.mrb[0].mxu0
  %v728 = vadd.f32 0.0, %v727
  %v729 = vpop.f32.mrb[0].mxu0
  %730 = vmatprep.mubr.bf16.mxu0 0
  %731 = vmatmul.mubr.bf16.gmra.mrb[0].mxu0 %v412
  %v732 = vpop.f32.mrb[0].mxu0
  %v733 = vadd.f32 0.0, %v732
  %v734 = vpop.f32.mrb[0].mxu0
  %v735 = vpop.f32.mrb[0].mxu0
  %v736 = vadd.f32 0.0, %v735
  %v737 = vpop.f32.mrb[0].mxu0
  %738 = vmatprep.mubr.bf16.mxu0 0
  %739 = vmatmul.mubr.bf16.gmra.mrb[0].mxu0 %v413
  %v740 = vpop.f32.mrb[0].mxu0
  %v741 = vadd.f32 0.0, %v740
  %v742 = vpop.f32.mrb[0].mxu0
  %v743 = vpop.f32.mrb[0].mxu0
  %v744 = vadd.f32 0.0, %v743
  %v745 = vpop.f32.mrb[0].mxu0
  %746 = vmatprep.mubr.bf16.mxu0 0
  %747 = vmatmul.mubr.bf16.gmra.mrb[0].mxu0 %v414
  %v748 = vpop.f32.mrb[0].mxu0
  %v749 = vadd.f32 0.0, %v748
  %v750 = vpop.f32.mrb[0].mxu0
  %v751 = vpop.f32.mrb[0].mxu0
  %v752 = vadd.f32 0.0, %v751
  %v753 = vpop.f32.mrb[0].mxu0
  %754 = vmatprep.mubr.bf16.mxu0 0
  %755 = vmatmul.mubr.bf16.gmra.mrb[0].mxu0 %v415
  %v756 = vpop.f32.mrb[0].mxu0
  %v757 = vadd.f32 0.0, %v756
  %v758 = vpop.f32.mrb[0].mxu0
  %v759 = vpop.f32.mrb[0].mxu0
  %v760 = vadd.f32 0.0, %v759
  %v761 = vpop.f32.mrb[0].mxu0
  %762 = vmatprep.mubr.bf16.mxu0 0
  %763 = vmatmul.mubr.bf16.gmra.mrb[0].mxu0 %v416
  %v764 = vpop.f32.mrb[0].mxu0
  %v765 = vadd.f32 0.0, %v764
  %v766 = vpop.f32.mrb[0].mxu0
  %v767 = vpop.f32.mrb[0].mxu0
  %v768 = vadd.f32 0.0, %v767
  %v769 = vpop.f32.mrb[0].mxu0
  %770 = vmatprep.mubr.bf16.mxu0 0
  %771 = vmatmul.mubr.bf16.gmra.mrb[0].mxu0 %v417
  %v772 = vpop.f32.mrb[0].mxu0
  %v773 = vadd.f32 0.0, %v772
  %v774 = vpop.f32.mrb[0].mxu0
  %v775 = vpop.f32.mrb[0].mxu0
  %v776 = vadd.f32 0.0, %v775
  %v777 = vpop.f32.mrb[0].mxu0
  %778 = vmatprep.mubr.bf16.mxu0 0
  %779 = vmatmul.mubr.bf16.gmra.mrb[0].mxu0 %v418
  %v780 = vpop.f32.mrb[0].mxu0
  %v781 = vadd.f32 0.0, %v780
  %v782 = vpop.f32.mrb[0].mxu0
  %v783 = vpop.f32.mrb[0].mxu0
  %v784 = vadd.f32 0.0, %v783
  %v785 = vpop.f32.mrb[0].mxu0
  %786 = vmatprep.mubr.bf16.mxu0 0
  %787 = vmatmul.mubr.bf16.gmra.mrb[0].mxu0 %v419
  %v788 = vpop.f32.mrb[0].mxu0
  %v789 = vadd.f32 0.0, %v788
  %v790 = vpop.f32.mrb[0].mxu0
  %v791 = vpop.f32.mrb[0].mxu0
  %v792 = vadd.f32 0.0, %v791
  %v793 = vpop.f32.mrb[0].mxu0
  %794 = vmatprep.mubr.bf16.mxu0 0
  %795 = vmatmul.mubr.bf16.gmra.mrb[0].mxu0 %v420
  %v796 = vpop.f32.mrb[0].mxu0
  %v797 = vadd.f32 0.0, %v796
  %v798 = vpop.f32.mrb[0].mxu0
  %v799 = vpop.f32.mrb[0].mxu0
  %v800 = vadd.f32 0.0, %v799
  %v801 = vpop.f32.mrb[0].mxu0
  %802 = vmatprep.mubr.bf16.mxu0 0
  %803 = vmatmul.mubr.bf16.gmra.mrb[0].mxu0 %v421
  %v804 = vpop.f32.mrb[0].mxu0
  %v805 = vadd.f32 0.0, %v804
  %v806 = vpop.f32.mrb[0].mxu0
  %v807 = vpop.f32.mrb[0].mxu0
  %v808 = vadd.f32 0.0, %v807
  %v809 = vpop.f32.mrb[0].mxu0
  %810 = vmatprep.mubr.bf16.mxu0 0
  %811 = vmatmul.mubr.bf16.gmra.mrb[0].mxu0 %v422
  %v812 = vpop.f32.mrb[0].mxu0
  %v813 = vadd.f32 0.0, %v812
  %v814 = vpop.f32.mrb[0].mxu0
  %v815 = vpop.f32.mrb[0].mxu0
  %v816 = vadd.f32 0.0, %v815
  %v817 = vpop.f32.mrb[0].mxu0
  %818 = vmatprep.mubr.bf16.mxu0 0
  %819 = vmatmul.mubr.bf16.gmra.mrb[0].mxu0 %v423
  %v820 = vpop.f32.mrb[0].mxu0
  %v821 = vadd.f32 0.0, %v820
  %v822 = vpop.f32.mrb[0].mxu0
  %v823 = vpop.f32.mrb[0].mxu0
  %v824 = vadd.f32 0.0, %v823
  %v825 = vpop.f32.mrb[0].mxu0
  %826 = vmatprep.mubr.bf16.mxu0 0
  %827 = vmatmul.mubr.bf16.gmra.mrb[0].mxu0 %v424
  %v828 = vpop.f32.mrb[0].mxu0
  %v829 = vadd.f32 0.0, %v828
  %v830 = vpop.f32.mrb[0].mxu0
  %v831 = vpop.f32.mrb[0].mxu0
  %v832 = vadd.f32 0.0, %v831
  %v833 = vpop.f32.mrb[0].mxu0
  %834 = vmatprep.mubr.bf16.mxu0 0
  %835 = vmatmul.mubr.bf16.gmra.mrb[0].mxu0 %v425
  %v836 = vpop.f32.mrb[0].mxu0
  %v837 = vadd.f32 0.0, %v836
  %v838 = vpop.f32.mrb[0].mxu0
  %v839 = vpop.f32.mrb[0].mxu0
  %v840 = vadd.f32 0.0, %v839
  %v841 = vpop.f32.mrb[0].mxu0
  %842 = vmatprep.mubr.bf16.mxu0 0
  %843 = vmatmul.mubr.bf16.gmra.mrb[0].mxu0 %v426
  %v844 = vpop.f32.mrb[0].mxu0
  %v845 = vadd.f32 0.0, %v844
  %v846 = vpop.f32.mrb[0].mxu0
  %v847 = vpop.f32.mrb[0].mxu0
  %v848 = vadd.f32 0.0, %v847
  %v849 = vpop.f32.mrb[0].mxu0
  %850 = vmatprep.mubr.bf16.mxu0 0
  %851 = vmatmul.mubr.bf16.gmra.mrb[0].mxu0 %v427
  %v852 = vpop.f32.mrb[0].mxu0
  %v853 = vadd.f32 0.0, %v852
  %v854 = vpop.f32.mrb[0].mxu0
  %v855 = vpop.f32.mrb[0].mxu0
  %v856 = vadd.f32 0.0, %v855
  %v857 = vpop.f32.mrb[0].mxu0
  %858 = vmatprep.mubr.bf16.mxu0 0
  %859 = vmatmul.mubr.bf16.gmra.mrb[0].mxu0 %v428
  %v860 = vpop.f32.mrb[0].mxu0
  %v861 = vadd.f32 0.0, %v860
  %v862 = vpop.f32.mrb[0].mxu0
  %v863 = vpop.f32.mrb[0].mxu0
  %v864 = vadd.f32 0.0, %v863
  %v865 = vpop.f32.mrb[0].mxu0
  %866 = vmatprep.mubr.bf16.mxu0 0
  %867 = vmatmul.mubr.bf16.gmra.mrb[0].mxu0 %v429
  %v868 = vpop.f32.mrb[0].mxu0
  %v869 = vadd.f32 0.0, %v868
  %v870 = vpop.f32.mrb[0].mxu0
  %v871 = vpop.f32.mrb[0].mxu0
  %v872 = vadd.f32 0.0, %v871
  %v873 = vpop.f32.mrb[0].mxu0
  %874 = vmatprep.mubr.bf16.mxu0 0
  %875 = vmatmul.mubr.bf16.gmra.mrb[0].mxu0 %v430
  %v876 = vpop.f32.mrb[0].mxu0
  %v877 = vadd.f32 0.0, %v876
  %v878 = vpop.f32.mrb[0].mxu0
  %v879 = vpop.f32.mrb[0].mxu0
  %v880 = vadd.f32 0.0, %v879
  %v881 = vpop.f32.mrb[0].mxu0
  %882 = vmatprep.mubr.bf16.mxu0 0
  %883 = vmatmul.mubr.bf16.gmra.mrb[0].mxu0 %v431
  %v884 = vpop.f32.mrb[0].mxu0
  %v885 = vadd.f32 0.0, %v884
  %v886 = vpop.f32.mrb[0].mxu0
  %v887 = vpop.f32.mrb[0].mxu0
  %v888 = vadd.f32 0.0, %v887
  %v889 = vpop.f32.mrb[0].mxu0
  %890 = vmatprep.mubr.bf16.mxu0 0
  %891 = vmatmul.mubr.bf16.gmra.mrb[0].mxu0 %v432
  %v892 = vpop.f32.mrb[0].mxu0
  %v893 = vadd.f32 0.0, %v892
  %v894 = vpop.f32.mrb[0].mxu0
  %v895 = vpop.f32.mrb[0].mxu0
  %v896 = vadd.f32 0.0, %v895
  %v897 = vpop.f32.mrb[0].mxu0
  %898 = vmatprep.mubr.bf16.mxu0 0
  %899 = vmatmul.mubr.bf16.gmra.mrb[0].mxu0 %v433
  %v900 = vpop.f32.mrb[0].mxu0
  %v901 = vadd.f32 0.0, %v900
  %v902 = vpop.f32.mrb[0].mxu0
  %v903 = vpop.f32.mrb[0].mxu0
  %v904 = vadd.f32 0.0, %v903
  %v905 = vpop.f32.mrb[0].mxu0
  %906 = vmatprep.mubr.bf16.mxu0 0
  %907 = vmatmul.mubr.bf16.gmra.mrb[0].mxu0 %v434
  %v908 = vpop.f32.mrb[0].mxu0
  %v909 = vadd.f32 0.0, %v908
  %v910 = vpop.f32.mrb[0].mxu0
  %v911 = vpop.f32.mrb[0].mxu0
  %v912 = vadd.f32 0.0, %v911
  %v913 = vpop.f32.mrb[0].mxu0
  %914 = vmatprep.mubr.bf16.mxu0 0
  %915 = vmatmul.mubr.bf16.gmra.mrb[0].mxu0 %v435
  %v916 = vpop.f32.mrb[0].mxu0
  %v917 = vadd.f32 0.0, %v916
  %v918 = vpop.f32.mrb[0].mxu0
  %v919 = vpop.f32.mrb[0].mxu0
  %v920 = vadd.f32 0.0, %v919
  %v921 = vpop.f32.mrb[0].mxu0
  %922 = vmatprep.mubr.bf16.mxu0 0
  %923 = vmatmul.mubr.bf16.gmra.mrb[0].mxu0 %v436
  %v924 = vpop.f32.mrb[0].mxu0
  %v925 = vadd.f32 0.0, %v924
  %v926 = vpop.f32.mrb[0].mxu0
  %v927 = vpop.f32.mrb[0].mxu0
  %v928 = vadd.f32 0.0, %v927
  %v929 = vpop.f32.mrb[0].mxu0
  %930 = vmatprep.mubr.bf16.mxu0 0
  %931 = vmatmul.mubr.bf16.gmra.mrb[0].mxu0 %v437
  %v932 = vpop.f32.mrb[0].mxu0
  %v933 = vadd.f32 0.0, %v932
  %v934 = vpop.f32.mrb[0].mxu0
  %v935 = vpop.f32.mrb[0].mxu0
  %v936 = vadd.f32 0.0, %v935
  %v937 = vpop.f32.mrb[0].mxu0
  %938 = vmatprep.mubr.bf16.mxu0 0
  %939 = vmatmul.mubr.bf16.gmra.mrb[0].mxu0 %v438
  %v940 = vpop.f32.mrb[0].mxu0
  %v941 = vadd.f32 0.0, %v940
  %v942 = vpop.f32.mrb[0].mxu0
  %v943 = vpop.f32.mrb[0].mxu0
  %v944 = vadd.f32 0.0, %v943
  %v945 = vpop.f32.mrb[0].mxu0
  %946 = vmatprep.mubr.bf16.mxu0 0
  %947 = vmatmul.mubr.bf16.gmra.mrb[0].mxu0 %v439
  %v948 = vpop.f32.mrb[0].mxu0
  %v949 = vadd.f32 0.0, %v948
  %v950 = vpop.f32.mrb[0].mxu0
  %v951 = vpop.f32.mrb[0].mxu0
  %v952 = vadd.f32 0.0, %v951
  %v953 = vpop.f32.mrb[0].mxu0
  %954 = vmatprep.mubr.bf16.mxu0 0
  %955 = vmatmul.mubr.bf16.gmra.mrb[0].mxu0 %v440
  %v956 = vpop.f32.mrb[0].mxu0
  %v957 = vadd.f32 0.0, %v956
  %v958 = vpop.f32.mrb[0].mxu0
  %v959 = vpop.f32.mrb[0].mxu0
  %v960 = vadd.f32 0.0, %v959
  %v961 = vpop.f32.mrb[0].mxu0
  %962 = vmatprep.mubr.bf16.mxu0 0
  %963 = vmatmul.mubr.bf16.gmra.mrb[0].mxu0 %v441
  %v964 = vpop.f32.mrb[0].mxu0
  %v965 = vadd.f32 0.0, %v964
  %v966 = vpop.f32.mrb[0].mxu0
  %v967 = vpop.f32.mrb[0].mxu0
  %v968 = vadd.f32 0.0, %v967
  %v969 = vpop.f32.mrb[0].mxu0
  %970 = vmatprep.mubr.bf16.mxu0 0
  %971 = vmatmul.mubr.bf16.gmra.mrb[0].mxu0 %v442
  %v972 = vpop.f32.mrb[0].mxu0
  %v973 = vadd.f32 0.0, %v972
  %v974 = vpop.f32.mrb[0].mxu0
  %v975 = vpop.f32.mrb[0].mxu0
  %v976 = vadd.f32 0.0, %v975
  %v977 = vpop.f32.mrb[0].mxu0
  %978 = vmatprep.mubr.bf16.mxu0 0
  %979 = vmatmul.mubr.bf16.gmra.mrb[0].mxu0 %v443
  %v980 = vpop.f32.mrb[0].mxu0
  %v981 = vadd.f32 0.0, %v980
  %v982 = vpop.f32.mrb[0].mxu0
  %v983 = vpop.f32.mrb[0].mxu0
  %v984 = vadd.f32 0.0, %v983
  %v985 = vpop.f32.mrb[0].mxu0
  %986 = vmatprep.mubr.bf16.mxu0 0
  %987 = vmatmul.mubr.bf16.gmra.mrb[0].mxu0 %v444
  %v988 = vpop.f32.mrb[0].mxu0
  %v989 = vadd.f32 0.0, %v988
  %v990 = vpop.f32.mrb[0].mxu0
  %v991 = vpop.f32.mrb[0].mxu0
  %v992 = vadd.f32 0.0, %v991
  %v993 = vpop.f32.mrb[0].mxu0
  %994 = vmatprep.mubr.bf16.mxu0 0
  %995 = vmatmul.mubr.bf16.gmra.mrb[0].mxu0 %v445
  %v996 = vpop.f32.mrb[0].mxu0
  %v997 = vadd.f32 0.0, %v996
  %v998 = vpop.f32.mrb[0].mxu0
  %v999 = vpop.f32.mrb[0].mxu0
  %v1000 = vadd.f32 0.0, %v999
  %v1001 = vpop.f32.mrb[0].mxu0
  %1002 = vmatprep.mubr.bf16.mxu0 0
  %1003 = vmatmul.mubr.bf16.gmra.mrb[0].mxu0 %v446
  %v1004 = vpop.f32.mrb[0].mxu0
  %v1005 = vadd.f32 0.0, %v1004
  %v1006 = vpop.f32.mrb[0].mxu0
  %v1007 = vpop.f32.mrb[0].mxu0
  %v1008 = vadd.f32 0.0, %v1007
  %v1009 = vpop.f32.mrb[0].mxu0
  %1010 = vmatprep.mubr.bf16.mxu0 0
  %1011 = vmatmul.mubr.bf16.gmra.mrb[0].mxu0 %v447
  %v1012 = vpop.f32.mrb[0].mxu0
  %v1013 = vadd.f32 0.0, %v1012
  %v1014 = vpop.f32.mrb[0].mxu0
  %v1015 = vpop.f32.mrb[0].mxu0
  %v1016 = vadd.f32 0.0, %v1015
  %v1017 = vpop.f32.mrb[0].mxu0
  %1018 = vmatprep.mubr.bf16.mxu0 0
  %1019 = vmatmul.mubr.bf16.gmra.mrb[0].mxu0 %v448
  %v1020 = vpop.f32.mrb[0].mxu0
  %v1021 = vadd.f32 0.0, %v1020
  %v1022 = vpop.f32.mrb[0].mxu0
  %v1023 = vpop.f32.mrb[0].mxu0
  %v1024 = vadd.f32 0.0, %v1023
  %v1025 = vpop.f32.mrb[0].mxu0
  %1026 = vmatprep.mubr.bf16.mxu0 0
  %1027 = vmatmul.mubr.bf16.gmra.mrb[0].mxu0 %v449
  %v1028 = vpop.f32.mrb[0].mxu0
  %v1029 = vadd.f32 0.0, %v1028
  %v1030 = vpop.f32.mrb[0].mxu0
  %v1031 = vpop.f32.mrb[0].mxu0
  %v1032 = vadd.f32 0.0, %v1031
  %v1033 = vpop.f32.mrb[0].mxu0
  %1034 = vdwg.mxu0
  %v1035 = vmax.f32 %v589, 0.0
  %v1036 = vmax.f32 %v592, 0.0
  %v1037 = vmax.f32 %v597, 0.0
  %v1038 = vmax.f32 %v600, 0.0
  %v1039 = vmax.f32 %v605, 0.0
  %v1040 = vmax.f32 %v608, 0.0
  %v1041 = vmax.f32 %v613, 0.0
  %v1042 = vmax.f32 %v616, 0.0
  %v1043 = vmax.f32 %v621, 0.0
  %v1044 = vmax.f32 %v624, 0.0
  %v1045 = vmax.f32 %v629, 0.0
  %v1046 = vmax.f32 %v632, 0.0
  %v1047 = vmax.f32 %v637, 0.0
  %v1048 = vmax.f32 %v640, 0.0
  %v1049 = vmax.f32 %v645, 0.0
  %v1050 = vmax.f32 %v648, 0.0
  %v1051 = vmax.f32 %v653, 0.0
  %v1052 = vmax.f32 %v656, 0.0
  %v1053 = vmax.f32 %v661, 0.0
  %v1054 = vmax.f32 %v664, 0.0
  %v1055 = vmax.f32 %v669, 0.0
  %v1056 = vmax.f32 %v672, 0.0
  %v1057 = vmax.f32 %v677, 0.0
  %v1058 = vmax.f32 %v680, 0.0
  %v1059 = vmax.f32 %v685, 0.0
  %v1060 = vmax.f32 %v688, 0.0
  %v1061 = vmax.f32 %v693, 0.0
  %v1062 = vmax.f32 %v696, 0.0
  %v1063 = vmax.f32 %v701, 0.0
  %v1064 = vmax.f32 %v704, 0.0
  %v1065 = vmax.f32 %v709, 0.0
  %v1066 = vmax.f32 %v712, 0.0
  %v1067 = vmax.f32 %v717, 0.0
  %v1068 = vmax.f32 %v720, 0.0
  %v1069 = vmax.f32 %v725, 0.0
  %v1070 = vmax.f32 %v728, 0.0
  %v1071 = vmax.f32 %v733, 0.0
  %v1072 = vmax.f32 %v736, 0.0
  %v1073 = vmax.f32 %v741, 0.0
  %v1074 = vmax.f32 %v744, 0.0
  %v1075 = vmax.f32 %v749, 0.0
  %v1076 = vmax.f32 %v752, 0.0
  %v1077 = vmax.f32 %v757, 0.0
  %v1078 = vmax.f32 %v760, 0.0
  %v1079 = vmax.f32 %v765, 0.0
  %v1080 = vmax.f32 %v768, 0.0
  %v1081 = vmax.f32 %v773, 0.0
  %v1082 = vmax.f32 %v776, 0.0
  %v1083 = vmax.f32 %v781, 0.0
  %v1084 = vmax.f32 %v784, 0.0
  %v1085 = vmax.f32 %v789, 0.0
  %v1086 = vmax.f32 %v792, 0.0
  %v1087 = vmax.f32 %v797, 0.0
  %v1088 = vmax.f32 %v800, 0.0
  %v1089 = vmax.f32 %v805, 0.0
  %v1090 = vmax.f32 %v808, 0.0
  %v1091 = vmax.f32 %v813, 0.0
  %v1092 = vmax.f32 %v816, 0.0
  %v1093 = vmax.f32 %v821, 0.0
  %v1094 = vmax.f32 %v824, 0.0
  %v1095 = vmax.f32 %v829, 0.0
  %v1096 = vmax.f32 %v832, 0.0
  %v1097 = vmax.f32 %v837, 0.0
  %v1098 = vmax.f32 %v840, 0.0
  %v1099 = vmax.f32 %v845, 0.0
  %v1100 = vmax.f32 %v848, 0.0
  %v1101 = vmax.f32 %v853, 0.0
  %v1102 = vmax.f32 %v856, 0.0
  %v1103 = vmax.f32 %v861, 0.0
  %v1104 = vmax.f32 %v864, 0.0
  %v1105 = vmax.f32 %v869, 0.0
  %v1106 = vmax.f32 %v872, 0.0
  %v1107 = vmax.f32 %v877, 0.0
  %v1108 = vmax.f32 %v880, 0.0
  %v1109 = vmax.f32 %v885, 0.0
  %v1110 = vmax.f32 %v888, 0.0
  %v1111 = vmax.f32 %v893, 0.0
  %v1112 = vmax.f32 %v896, 0.0
  %v1113 = vmax.f32 %v901, 0.0
  %v1114 = vmax.f32 %v904, 0.0
  %v1115 = vmax.f32 %v909, 0.0
  %v1116 = vmax.f32 %v912, 0.0
  %v1117 = vmax.f32 %v917, 0.0
  %v1118 = vmax.f32 %v920, 0.0
  %v1119 = vmax.f32 %v925, 0.0
  %v1120 = vmax.f32 %v928, 0.0
  %v1121 = vmax.f32 %v933, 0.0
  %v1122 = vmax.f32 %v936, 0.0
  %v1123 = vmax.f32 %v941, 0.0
  %v1124 = vmax.f32 %v944, 0.0
  %v1125 = vmax.f32 %v949, 0.0
  %v1126 = vmax.f32 %v952, 0.0
  %v1127 = vmax.f32 %v957, 0.0
  %v1128 = vmax.f32 %v960, 0.0
  %v1129 = vmax.f32 %v965, 0.0
  %v1130 = vmax.f32 %v968, 0.0
  %v1131 = vmax.f32 %v973, 0.0
  %v1132 = vmax.f32 %v976, 0.0
  %v1133 = vmax.f32 %v981, 0.0
  %v1134 = vmax.f32 %v984, 0.0
  %v1135 = vmax.f32 %v989, 0.0
  %v1136 = vmax.f32 %v992, 0.0
  %v1137 = vmax.f32 %v997, 0.0
  %v1138 = vmax.f32 %v1000, 0.0
  %v1139 = vmax.f32 %v1005, 0.0
  %v1140 = vmax.f32 %v1008, 0.0
  %v1141 = vmax.f32 %v1013, 0.0
  %v1142 = vmax.f32 %v1016, 0.0
  %v1143 = vmax.f32 %v1021, 0.0
  %v1144 = vmax.f32 %v1024, 0.0
  %v1145 = vmax.f32 %v1029, 0.0
  %v1146 = vmax.f32 %v1032, 0.0
  %v1147 = vld [vmem:[%s2] sm:$0xff]
  %v1148 = vld [vmem:[%s2 + $0x8] sm:$0xff]
  %v1149 = vld [vmem:[%s2 + $0x10] sm:$0xff]
  %v1150 = vld [vmem:[%s2 + $0x18] sm:$0xff]
  %v1151 = vld [vmem:[%s2 + $0x20] sm:$0xff]
  %v1152 = vld [vmem:[%s2 + $0x28] sm:$0xff]
  %v1153 = vld [vmem:[%s2 + $0x30] sm:$0xff]
  %v1154 = vld [vmem:[%s2 + $0x38] sm:$0xff]
  %v1155 = vld [vmem:[%s2 + $0x40] sm:$0xff]
  %v1156 = vld [vmem:[%s2 + $0x48] sm:$0xff]
  %v1157 = vld [vmem:[%s2 + $0x50] sm:$0xff]
  %v1158 = vld [vmem:[%s2 + $0x58] sm:$0xff]
  %v1159 = vld [vmem:[%s2 + $0x60] sm:$0xff]
  %v1160 = vld [vmem:[%s2 + $0x68] sm:$0xff]
  %v1161 = vld [vmem:[%s2 + $0x70] sm:$0xff]
  %v1162 = vld [vmem:[%s2 + $0x78] sm:$0xff]
  %v1163 = vld [vmem:[%s2 + $0x80] sm:$0xff]
  %v1164 = vld [vmem:[%s2 + $0x88] sm:$0xff]
  %v1165 = vld [vmem:[%s2 + $0x90] sm:$0xff]
  %v1166 = vld [vmem:[%s2 + $0x98] sm:$0xff]
  %v1167 = vld [vmem:[%s2 + $0xa0] sm:$0xff]
  %v1168 = vld [vmem:[%s2 + $0xa8] sm:$0xff]
  %v1169 = vld [vmem:[%s2 + $0xb0] sm:$0xff]
  %v1170 = vld [vmem:[%s2 + $0xb8] sm:$0xff]
  %v1171 = vld [vmem:[%s2 + $0xc0] sm:$0xff]
  %v1172 = vld [vmem:[%s2 + $0xc8] sm:$0xff]
  %v1173 = vld [vmem:[%s2 + $0xd0] sm:$0xff]
  %v1174 = vld [vmem:[%s2 + $0xd8] sm:$0xff]
  %v1175 = vld [vmem:[%s2 + $0xe0] sm:$0xff]
  %v1176 = vld [vmem:[%s2 + $0xe8] sm:$0xff]
  %v1177 = vld [vmem:[%s2 + $0xf0] sm:$0xff]
  %v1178 = vld [vmem:[%s2 + $0xf8] sm:$0xff]
  %v1179 = vld [vmem:[%s2 + $0x100] sm:$0xff]
  %v1180 = vld [vmem:[%s2 + $0x108] sm:$0xff]
  %v1181 = vld [vmem:[%s2 + $0x110] sm:$0xff]
  %v1182 = vld [vmem:[%s2 + $0x118] sm:$0xff]
  %v1183 = vld [vmem:[%s2 + $0x120] sm:$0xff]
  %v1184 = vld [vmem:[%s2 + $0x128] sm:$0xff]
  %v1185 = vld [vmem:[%s2 + $0x130] sm:$0xff]
  %v1186 = vld [vmem:[%s2 + $0x138] sm:$0xff]
  %v1187 = vld [vmem:[%s2 + $0x140] sm:$0xff]
  %v1188 = vld [vmem:[%s2 + $0x148] sm:$0xff]
  %v1189 = vld [vmem:[%s2 + $0x150] sm:$0xff]
  %v1190 = vld [vmem:[%s2 + $0x158] sm:$0xff]
  %v1191 = vld [vmem:[%s2 + $0x160] sm:$0xff]
  %v1192 = vld [vmem:[%s2 + $0x168] sm:$0xff]
  %v1193 = vld [vmem:[%s2 + $0x170] sm:$0xff]
  %v1194 = vld [vmem:[%s2 + $0x178] sm:$0xff]
  %v1195 = vld [vmem:[%s2 + $0x180] sm:$0xff]
  %1196 = vmatprep.subr.mxu0 0.0
  %1197 = vmatpush1.msra.mxu0 %v1035
  %1198 = vmatprep.subr.mxu0 0.0
  %1199 = vmatpush1.msra.mxu0 %v1036
  %1200 = vmatprep.subr.mxu0 0.0
  %1201 = vmatpush1.msra.mxu0 %v1037
  %1202 = vmatprep.subr.mxu0 0.0
  %1203 = vmatpush1.msra.mxu0 %v1038
  %1204 = vmatprep.subr.mxu0 0.0
  %1205 = vmatpush1.msra.mxu0 %v1039
  %1206 = vmatprep.subr.mxu0 0.0
  %1207 = vmatpush1.msra.mxu0 %v1040
  %1208 = vmatprep.subr.mxu0 0.0
  %1209 = vmatpush1.msra.mxu0 %v1041
  %1210 = vmatprep.subr.mxu0 0.0
  %1211 = vmatpush1.msra.mxu0 %v1042
  %1212 = vmatprep.subr.mxu0 0.0
  %1213 = vmatpush1.msra.mxu0 %v1043
  %1214 = vmatprep.subr.mxu0 0.0
  %1215 = vmatpush1.msra.mxu0 %v1044
  %1216 = vmatprep.subr.mxu0 0.0
  %1217 = vmatpush1.msra.mxu0 %v1045
  %1218 = vmatprep.subr.mxu0 0.0
  %1219 = vmatpush1.msra.mxu0 %v1046
  %1220 = vmatprep.subr.mxu0 0.0
  %1221 = vmatpush1.msra.mxu0 %v1047
  %1222 = vmatprep.subr.mxu0 0.0
  %1223 = vmatpush1.msra.mxu0 %v1048
  %1224 = vmatprep.subr.mxu0 0.0
  %1225 = vmatpush1.msra.mxu0 %v1049
  %1226 = vmatprep.subr.mxu0 0.0
  %1227 = vmatpush1.msra.mxu0 %v1050
  %1228 = vmatprep.subr.mxu0 0.0
  %1229 = vmatpush1.msra.mxu0 %v1051
  %1230 = vmatprep.subr.mxu0 0.0
  %1231 = vmatpush1.msra.mxu0 %v1052
  %1232 = vmatprep.subr.mxu0 0.0
  %1233 = vmatpush1.msra.mxu0 %v1053
  %1234 = vmatprep.subr.mxu0 0.0
  %1235 = vmatpush1.msra.mxu0 %v1054
  %1236 = vmatprep.subr.mxu0 0.0
  %1237 = vmatpush1.msra.mxu0 %v1055
  %1238 = vmatprep.subr.mxu0 0.0
  %1239 = vmatpush1.msra.mxu0 %v1056
  %1240 = vmatprep.subr.mxu0 0.0
  %1241 = vmatpush1.msra.mxu0 %v1057
  %1242 = vmatprep.subr.mxu0 0.0
  %1243 = vmatpush1.msra.mxu0 %v1058
  %1244 = vmatprep.subr.mxu0 0.0
  %1245 = vmatpush1.msra.mxu0 %v1059
  %1246 = vmatprep.subr.mxu0 0.0
  %1247 = vmatpush1.msra.mxu0 %v1060
  %1248 = vmatprep.subr.mxu0 0.0
  %1249 = vmatpush1.msra.mxu0 %v1061
  %1250 = vmatprep.subr.mxu0 0.0
  %1251 = vmatpush1.msra.mxu0 %v1062
  %1252 = vmatprep.subr.mxu0 0.0
  %1253 = vmatpush1.msra.mxu0 %v1063
  %1254 = vmatprep.subr.mxu0 0.0
  %1255 = vmatpush1.msra.mxu0 %v1064
  %1256 = vmatprep.subr.mxu0 0.0
  %1257 = vmatpush1.msra.mxu0 %v1065
  %1258 = vmatprep.subr.mxu0 0.0
  %1259 = vmatpush1.msra.mxu0 %v1066
  %1260 = vmatprep.mubr.f32.mxu0 %v1148
  %1261 = vmatmul.mubr.f32.gmra.mrb[0].mxu0 %v1147
  %v1262 = vpop.f32.mrb[0].mxu0
  %v1263 = vadd.f32 0.0, %v1262
  %v1264 = vpop.f32.mrb[0].mxu0
  %1265 = vmatprep.mubr.f32.mxu0 %v1155
  %1266 = vmatmul.mubr.f32.gmra.mrb[0].mxu0 %v1154
  %v1267 = vpop.f32.mrb[0].mxu0
  %v1268 = vadd.f32 0.0, %v1267
  %v1269 = vpop.f32.mrb[0].mxu0
  %1270 = vmatprep.mubr.f32.mxu0 %v1162
  %1271 = vmatmul.mubr.f32.gmra.mrb[0].mxu0 %v1161
  %v1272 = vpop.f32.mrb[0].mxu0
  %v1273 = vadd.f32 0.0, %v1272
  %v1274 = vpop.f32.mrb[0].mxu0
  %1275 = vmatprep.mubr.f32.mxu0 %v1169
  %1276 = vmatmul.mubr.f32.gmra.mrb[0].mxu0 %v1168
  %v1277 = vpop.f32.mrb[0].mxu0
  %v1278 = vadd.f32 0.0, %v1277
  %v1279 = vpop.f32.mrb[0].mxu0
  %1280 = vmatprep.mubr.f32.mxu0 %v1176
  %1281 = vmatmul.mubr.f32.gmra.mrb[0].mxu0 %v1175
  %v1282 = vpop.f32.mrb[0].mxu0
  %v1283 = vadd.f32 0.0, %v1282
  %v1284 = vpop.f32.mrb[0].mxu0
  %1285 = vmatprep.mubr.f32.mxu0 %v1183
  %1286 = vmatmul.mubr.f32.gmra.mrb[0].mxu0 %v1182
  %v1287 = vpop.f32.mrb[0].mxu0
  %v1288 = vadd.f32 0.0, %v1287
  %v1289 = vpop.f32.mrb[0].mxu0
  %1290 = vmatprep.mubr.f32.mxu0 %v1190
  %1291 = vmatmul.mubr.f32.gmra.mrb[0].mxu0 %v1189
  %v1292 = vpop.f32.mrb[0].mxu0
  %v1293 = vadd.f32 0.0, %v1292
  %v1294 = vpop.f32.mrb[0].mxu0
  %1295 = vdwg.mxu0
  %1296 = vmatprep.subr.mxu0 0.0
  %1297 = vmatpush1.msra.mxu0 %v1067
  %1298 = vmatprep.subr.mxu0 0.0
  %1299 = vmatpush1.msra.mxu0 %v1068
  %1300 = vmatprep.subr.mxu0 0.0
  %1301 = vmatpush1.msra.mxu0 %v1069
  %1302 = vmatprep.subr.mxu0 0.0
  %1303 = vmatpush1.msra.mxu0 %v1070
  %1304 = vmatprep.subr.mxu0 0.0
  %1305 = vmatpush1.msra.mxu0 %v1071
  %1306 = vmatprep.subr.mxu0 0.0
  %1307 = vmatpush1.msra.mxu0 %v1072
  %1308 = vmatprep.subr.mxu0 0.0
  %1309 = vmatpush1.msra.mxu0 %v1073
  %1310 = vmatprep.subr.mxu0 0.0
  %1311 = vmatpush1.msra.mxu0 %v1074
  %1312 = vmatprep.subr.mxu0 0.0
  %1313 = vmatpush1.msra.mxu0 %v1075
  %1314 = vmatprep.subr.mxu0 0.0
  %1315 = vmatpush1.msra.mxu0 %v1076
  %1316 = vmatprep.subr.mxu0 0.0
  %1317 = vmatpush1.msra.mxu0 %v1077
  %1318 = vmatprep.subr.mxu0 0.0
  %1319 = vmatpush1.msra.mxu0 %v1078
  %1320 = vmatprep.subr.mxu0 0.0
  %1321 = vmatpush1.msra.mxu0 %v1079
  %1322 = vmatprep.subr.mxu0 0.0
  %1323 = vmatpush1.msra.mxu0 %v1080
  %1324 = vmatprep.subr.mxu0 0.0
  %1325 = vmatpush1.msra.mxu0 %v1081
  %1326 = vmatprep.subr.mxu0 0.0
  %1327 = vmatpush1.msra.mxu0 %v1082
  %1328 = vmatprep.subr.mxu0 0.0
  %1329 = vmatpush1.msra.mxu0 %v1083
  %1330 = vmatprep.subr.mxu0 0.0
  %1331 = vmatpush1.msra.mxu0 %v1084
  %1332 = vmatprep.subr.mxu0 0.0
  %1333 = vmatpush1.msra.mxu0 %v1085
  %1334 = vmatprep.subr.mxu0 0.0
  %1335 = vmatpush1.msra.mxu0 %v1086
  %1336 = vmatprep.subr.mxu0 0.0
  %1337 = vmatpush1.msra.mxu0 %v1087
  %1338 = vmatprep.subr.mxu0 0.0
  %1339 = vmatpush1.msra.mxu0 %v1088
  %1340 = vmatprep.subr.mxu0 0.0
  %1341 = vmatpush1.msra.mxu0 %v1089
  %1342 = vmatprep.subr.mxu0 0.0
  %1343 = vmatpush1.msra.mxu0 %v1090
  %1344 = vmatprep.subr.mxu0 0.0
  %1345 = vmatpush1.msra.mxu0 %v1091
  %1346 = vmatprep.subr.mxu0 0.0
  %1347 = vmatpush1.msra.mxu0 %v1092
  %1348 = vmatprep.subr.mxu0 0.0
  %1349 = vmatpush1.msra.mxu0 %v1093
  %1350 = vmatprep.subr.mxu0 0.0
  %1351 = vmatpush1.msra.mxu0 %v1094
  %1352 = vmatprep.subr.mxu0 0.0
  %1353 = vmatpush1.msra.mxu0 %v1095
  %1354 = vmatprep.subr.mxu0 0.0
  %1355 = vmatpush1.msra.mxu0 %v1096
  %1356 = vmatprep.subr.mxu0 0.0
  %1357 = vmatpush1.msra.mxu0 %v1097
  %1358 = vmatprep.subr.mxu0 0.0
  %1359 = vmatpush1.msra.mxu0 %v1098
  %1360 = vmatprep.mubr.f32.mxu0 %v1150
  %1361 = vmatmul.mubr.f32.gmra.mrb[0].mxu0 %v1149
  %v1362 = vpop.f32.mrb[0].mxu0
  %v1363 = vadd.f32 %v1263, %v1362
  %v1364 = vpop.f32.mrb[0].mxu0
  %1365 = vmatprep.mubr.f32.mxu0 %v1157
  %1366 = vmatmul.mubr.f32.gmra.mrb[0].mxu0 %v1156
  %v1367 = vpop.f32.mrb[0].mxu0
  %v1368 = vadd.f32 %v1268, %v1367
  %v1369 = vpop.f32.mrb[0].mxu0
  %1370 = vmatprep.mubr.f32.mxu0 %v1164
  %1371 = vmatmul.mubr.f32.gmra.mrb[0].mxu0 %v1163
  %v1372 = vpop.f32.mrb[0].mxu0
  %v1373 = vadd.f32 %v1273, %v1372
  %v1374 = vpop.f32.mrb[0].mxu0
  %1375 = vmatprep.mubr.f32.mxu0 %v1171
  %1376 = vmatmul.mubr.f32.gmra.mrb[0].mxu0 %v1170
  %v1377 = vpop.f32.mrb[0].mxu0
  %v1378 = vadd.f32 %v1278, %v1377
  %v1379 = vpop.f32.mrb[0].mxu0
  %1380 = vmatprep.mubr.f32.mxu0 %v1178
  %1381 = vmatmul.mubr.f32.gmra.mrb[0].mxu0 %v1177
  %v1382 = vpop.f32.mrb[0].mxu0
  %v1383 = vadd.f32 %v1283, %v1382
  %v1384 = vpop.f32.mrb[0].mxu0
  %1385 = vmatprep.mubr.f32.mxu0 %v1185
  %1386 = vmatmul.mubr.f32.gmra.mrb[0].mxu0 %v1184
  %v1387 = vpop.f32.mrb[0].mxu0
  %v1388 = vadd.f32 %v1288, %v1387
  %v1389 = vpop.f32.mrb[0].mxu0
  %1390 = vmatprep.mubr.f32.mxu0 %v1192
  %1391 = vmatmul.mubr.f32.gmra.mrb[0].mxu0 %v1191
  %v1392 = vpop.f32.mrb[0].mxu0
  %v1393 = vadd.f32 %v1293, %v1392
  %v1394 = vpop.f32.mrb[0].mxu0
  %1395 = vdwg.mxu0
  %1396 = vmatprep.subr.mxu0 0.0
  %1397 = vmatpush1.msra.mxu0 %v1099
  %1398 = vmatprep.subr.mxu0 0.0
  %1399 = vmatpush1.msra.mxu0 %v1100
  %1400 = vmatprep.subr.mxu0 0.0
  %1401 = vmatpush1.msra.mxu0 %v1101
  %1402 = vmatprep.subr.mxu0 0.0
  %1403 = vmatpush1.msra.mxu0 %v1102
  %1404 = vmatprep.subr.mxu0 0.0
  %1405 = vmatpush1.msra.mxu0 %v1103
  %1406 = vmatprep.subr.mxu0 0.0
  %1407 = vmatpush1.msra.mxu0 %v1104
  %1408 = vmatprep.subr.mxu0 0.0
  %1409 = vmatpush1.msra.mxu0 %v1105
  %1410 = vmatprep.subr.mxu0 0.0
  %1411 = vmatpush1.msra.mxu0 %v1106
  %1412 = vmatprep.subr.mxu0 0.0
  %1413 = vmatpush1.msra.mxu0 %v1107
  %1414 = vmatprep.subr.mxu0 0.0
  %1415 = vmatpush1.msra.mxu0 %v1108
  %1416 = vmatprep.subr.mxu0 0.0
  %1417 = vmatpush1.msra.mxu0 %v1109
  %1418 = vmatprep.subr.mxu0 0.0
  %1419 = vmatpush1.msra.mxu0 %v1110
  %1420 = vmatprep.subr.mxu0 0.0
  %1421 = vmatpush1.msra.mxu0 %v1111
  %1422 = vmatprep.subr.mxu0 0.0
  %1423 = vmatpush1.msra.mxu0 %v1112
  %1424 = vmatprep.subr.mxu0 0.0
  %1425 = vmatpush1.msra.mxu0 %v1113
  %1426 = vmatprep.subr.mxu0 0.0
  %1427 = vmatpush1.msra.mxu0 %v1114
  %1428 = vmatprep.subr.mxu0 0.0
  %1429 = vmatpush1.msra.mxu0 %v1115
  %1430 = vmatprep.subr.mxu0 0.0
  %1431 = vmatpush1.msra.mxu0 %v1116
  %1432 = vmatprep.subr.mxu0 0.0
  %1433 = vmatpush1.msra.mxu0 %v1117
  %1434 = vmatprep.subr.mxu0 0.0
  %1435 = vmatpush1.msra.mxu0 %v1118
  %1436 = vmatprep.subr.mxu0 0.0
  %1437 = vmatpush1.msra.mxu0 %v1119
  %1438 = vmatprep.subr.mxu0 0.0
  %1439 = vmatpush1.msra.mxu0 %v1120
  %1440 = vmatprep.subr.mxu0 0.0
  %1441 = vmatpush1.msra.mxu0 %v1121
  %1442 = vmatprep.subr.mxu0 0.0
  %1443 = vmatpush1.msra.mxu0 %v1122
  %1444 = vmatprep.subr.mxu0 0.0
  %1445 = vmatpush1.msra.mxu0 %v1123
  %1446 = vmatprep.subr.mxu0 0.0
  %1447 = vmatpush1.msra.mxu0 %v1124
  %1448 = vmatprep.subr.mxu0 0.0
  %1449 = vmatpush1.msra.mxu0 %v1125
  %1450 = vmatprep.subr.mxu0 0.0
  %1451 = vmatpush1.msra.mxu0 %v1126
  %1452 = vmatprep.subr.mxu0 0.0
  %1453 = vmatpush1.msra.mxu0 %v1127
  %1454 = vmatprep.subr.mxu0 0.0
  %1455 = vmatpush1.msra.mxu0 %v1128
  %1456 = vmatprep.subr.mxu0 0.0
  %1457 = vmatpush1.msra.mxu0 %v1129
  %1458 = vmatprep.subr.mxu0 0.0
  %1459 = vmatpush1.msra.mxu0 %v1130
  %1460 = vmatprep.mubr.f32.mxu0 %v1152
  %1461 = vmatmul.mubr.f32.gmra.mrb[0].mxu0 %v1151
  %v1462 = vpop.f32.mrb[0].mxu0
  %v1463 = vadd.f32 %v1363, %v1462
  %v1464 = vpop.f32.mrb[0].mxu0
  %1465 = vmatprep.mubr.f32.mxu0 %v1159
  %1466 = vmatmul.mubr.f32.gmra.mrb[0].mxu0 %v1158
  %v1467 = vpop.f32.mrb[0].mxu0
  %v1468 = vadd.f32 %v1368, %v1467
  %v1469 = vpop.f32.mrb[0].mxu0
  %1470 = vmatprep.mubr.f32.mxu0 %v1166
  %1471 = vmatmul.mubr.f32.gmra.mrb[0].mxu0 %v1165
  %v1472 = vpop.f32.mrb[0].mxu0
  %v1473 = vadd.f32 %v1373, %v1472
  %v1474 = vpop.f32.mrb[0].mxu0
  %1475 = vmatprep.mubr.f32.mxu0 %v1173
  %1476 = vmatmul.mubr.f32.gmra.mrb[0].mxu0 %v1172
  %v1477 = vpop.f32.mrb[0].mxu0
  %v1478 = vadd.f32 %v1378, %v1477
  %v1479 = vpop.f32.mrb[0].mxu0
  %1480 = vmatprep.mubr.f32.mxu0 %v1180
  %1481 = vmatmul.mubr.f32.gmra.mrb[0].mxu0 %v1179
  %v1482 = vpop.f32.mrb[0].mxu0
  %v1483 = vadd.f32 %v1383, %v1482
  %v1484 = vpop.f32.mrb[0].mxu0
  %1485 = vmatprep.mubr.f32.mxu0 %v1187
  %1486 = vmatmul.mubr.f32.gmra.mrb[0].mxu0 %v1186
  %v1487 = vpop.f32.mrb[0].mxu0
  %v1488 = vadd.f32 %v1388, %v1487
  %v1489 = vpop.f32.mrb[0].mxu0
  %1490 = vmatprep.mubr.f32.mxu0 %v1194
  %1491 = vmatmul.mubr.f32.gmra.mrb[0].mxu0 %v1193
  %v1492 = vpop.f32.mrb[0].mxu0
  %v1493 = vadd.f32 %v1393, %v1492
  %v1494 = vpop.f32.mrb[0].mxu0
  %1495 = vdwg.mxu0
  %1496 = vmatprep.subr.mxu0 0.0
  %1497 = vmatpush1.msra.mxu0 %v1131
  %1498 = vmatprep.subr.mxu0 0.0
  %1499 = vmatpush1.msra.mxu0 %v1132
  %1500 = vmatprep.subr.mxu0 0.0
  %1501 = vmatpush1.msra.mxu0 %v1133
  %1502 = vmatprep.subr.mxu0 0.0
  %1503 = vmatpush1.msra.mxu0 %v1134
  %1504 = vmatprep.subr.mxu0 0.0
  %1505 = vmatpush1.msra.mxu0 %v1135
  %1506 = vmatprep.subr.mxu0 0.0
  %1507 = vmatpush1.msra.mxu0 %v1136
  %1508 = vmatprep.subr.mxu0 0.0
  %1509 = vmatpush1.msra.mxu0 %v1137
  %1510 = vmatprep.subr.mxu0 0.0
  %1511 = vmatpush1.msra.mxu0 %v1138
  %1512 = vmatprep.subr.mxu0 0.0
  %1513 = vmatpush1.msra.mxu0 %v1139
  %1514 = vmatprep.subr.mxu0 0.0
  %1515 = vmatpush1.msra.mxu0 %v1140
  %1516 = vmatprep.subr.mxu0 0.0
  %1517 = vmatpush1.msra.mxu0 %v1141
  %1518 = vmatprep.subr.mxu0 0.0
  %1519 = vmatpush1.msra.mxu0 %v1142
  %1520 = vmatprep.subr.mxu0 0.0
  %1521 = vmatpush1.msra.mxu0 %v1143
  %1522 = vmatprep.subr.mxu0 0.0
  %1523 = vmatpush1.msra.mxu0 %v1144
  %1524 = vmatprep.subr.mxu0 0.0
  %1525 = vmatpush1.msra.mxu0 %v1145
  %1526 = vmatprep.subr.mxu0 0.0
  %1527 = vmatpush1.msra.mxu0 %v1146
  %1528 = vmatprep.subr.mxu0 0.0
  %1529 = vmatpush1.msra.mxu0 0.0
  %1530 = vmatprep.subr.mxu0 0.0
  %1531 = vmatpush1.msra.mxu0 0.0
  %1532 = vmatprep.subr.mxu0 0.0
  %1533 = vmatpush1.msra.mxu0 0.0
  %1534 = vmatprep.subr.mxu0 0.0
  %1535 = vmatpush1.msra.mxu0 0.0
  %1536 = vmatprep.subr.mxu0 0.0
  %1537 = vmatpush1.msra.mxu0 0.0
  %1538 = vmatprep.subr.mxu0 0.0
  %1539 = vmatpush1.msra.mxu0 0.0
  %1540 = vmatprep.subr.mxu0 0.0
  %1541 = vmatpush1.msra.mxu0 0.0
  %1542 = vmatprep.subr.mxu0 0.0
  %1543 = vmatpush1.msra.mxu0 0.0
  %1544 = vmatprep.subr.mxu0 0.0
  %1545 = vmatpush1.msra.mxu0 0.0
  %1546 = vmatprep.subr.mxu0 0.0
  %1547 = vmatpush1.msra.mxu0 0.0
  %1548 = vmatprep.subr.mxu0 0.0
  %1549 = vmatpush1.msra.mxu0 0.0
  %1550 = vmatprep.subr.mxu0 0.0
  %1551 = vmatpush1.msra.mxu0 0.0
  %1552 = vmatprep.subr.mxu0 0.0
  %1553 = vmatpush1.msra.mxu0 0.0
  %1554 = vmatprep.subr.mxu0 0.0
  %1555 = vmatpush1.msra.mxu0 0.0
  %1556 = vmatprep.subr.mxu0 0.0
  %1557 = vmatpush1.msra.mxu0 0.0
  %1558 = vmatprep.subr.mxu0 0.0
  %1559 = vmatpush1.msra.mxu0 0.0
  %1560 = vmatprep.mubr.f32.mxu0 0.0
  %1561 = vmatmul.mubr.f32.gmra.mrb[0].mxu0 %v1153
  %v1562 = vpop.f32.mrb[0].mxu0
  %v1563 = vadd.f32 %v1463, %v1562
  %v1564 = vpop.f32.mrb[0].mxu0
  %1565 = vmatprep.mubr.f32.mxu0 0.0
  %1566 = vmatmul.mubr.f32.gmra.mrb[0].mxu0 %v1160
  %v1567 = vpop.f32.mrb[0].mxu0
  %v1568 = vadd.f32 %v1468, %v1567
  %v1569 = vpop.f32.mrb[0].mxu0
  %1570 = vmatprep.mubr.f32.mxu0 0.0
  %1571 = vmatmul.mubr.f32.gmra.mrb[0].mxu0 %v1167
  %v1572 = vpop.f32.mrb[0].mxu0
  %v1573 = vadd.f32 %v1473, %v1572
  %v1574 = vpop.f32.mrb[0].mxu0
  %1575 = vmatprep.mubr.f32.mxu0 0.0
  %1576 = vmatmul.mubr.f32.gmra.mrb[0].mxu0 %v1174
  %v1577 = vpop.f32.mrb[0].mxu0
  %v1578 = vadd.f32 %v1478, %v1577
  %v1579 = vpop.f32.mrb[0].mxu0
  %1580 = vmatprep.mubr.f32.mxu0 0.0
  %1581 = vmatmul.mubr.f32.gmra.mrb[0].mxu0 %v1181
  %v1582 = vpop.f32.mrb[0].mxu0
  %v1583 = vadd.f32 %v1483, %v1582
  %v1584 = vpop.f32.mrb[0].mxu0
  %1585 = vmatprep.mubr.f32.mxu0 0.0
  %1586 = vmatmul.mubr.f32.gmra.mrb[0].mxu0 %v1188
  %v1587 = vpop.f32.mrb[0].mxu0
  %v1588 = vadd.f32 %v1488, %v1587
  %v1589 = vpop.f32.mrb[0].mxu0
  %1590 = vmatprep.mubr.f32.mxu0 0.0
  %1591 = vmatmul.mubr.f32.gmra.mrb[0].mxu0 %v1195
  %v1592 = vpop.f32.mrb[0].mxu0
  %v1593 = vadd.f32 %v1493, %v1592
  %v1594 = vpop.f32.mrb[0].mxu0
  %1595 = vdwg.mxu0
  %v1596 = vld [vmem:[%s3] sm:$0xff]
  %v1597 = vld [vmem:[%s4] sm:$0x1]
  %1599 = vset.pattern.permute.xlu0 0
  %1600 = vperm.xlu0 %1599, %v1596
  %v1601 = vpop.permute.xlu0 %1600
  %v1604 = vlaneseq
  %v1605 = vshrl.u32 %v1604, 7
  %v1606 = vsub.s32 0, %v1605
  %v1607 = vrot.slane %v1597, %v1606
  %v1609 = vmul.f32 %v1601, %v1607
  %v1610 = vld [vmem:[%s5] sm:$0x1]
  %v1612 = vlaneseq
  %v1613 = vshrl.u32 %v1612, 7
  %v1614 = vsub.s32 0, %v1613
  %v1615 = vrot.slane %v1610, %v1614
  %v1617 = vadd.f32 %v1609, %v1615
  %v1618 = vmax.f32 %v1617, 0.0
  %v1619 = vpack.c.bf16 %v1618, %v1618
  %v1620 = vld [vmem:[%s6] sm:$0xf]
  %v1621 = vld [vmem:[%s6 + $0x4] sm:$0xf]
  %v1622 = vld [vmem:[%s6 + $0x8] sm:$0xf]
  %v1623 = vld [vmem:[%s6 + $0xc] sm:$0xf]
  %v1624 = vld [vmem:[%s6 + $0x10] sm:$0xf]
  %v1625 = vld [vmem:[%s6 + $0x14] sm:$0xf]
  %v1626 = vld [vmem:[%s6 + $0x18] sm:$0xf]
  %v1627 = vld [vmem:[%s6 + $0x1c] sm:$0xf]
  %v1628 = vld [vmem:[%s7] sm:$0x1]
  %v1630 = vlaneseq
  %v1631 = vshrl.u32 %v1630, 7
  %v1632 = vsub.s32 0, %v1631
  %v1633 = vrot.slane %v1628, %v1632
  %v1643 = vunpack.c.l.b16 %v1620
  %v1644 = vunpack.c.l.b16 %v1621
  %v1645 = vunpack.c.l.b16 %v1622
  %v1646 = vunpack.c.l.b16 %v1623
  %v1647 = vunpack.c.l.b16 %v1624
  %v1648 = vunpack.c.l.b16 %v1625
  %v1649 = vunpack.c.l.b16 %v1626
  %v1650 = vunpack.c.l.b16 %v1627
  %v1651 = vpack.c.b16 %v1644, %v1643
  %v1652 = vpack.c.b16 %v1646, %v1645
  %v1653 = vpack.c.b16 %v1648, %v1647
  %v1654 = vpack.c.b16 %v1650, %v1649
  %vm1659 = vcmask 523264
  %v1661 = vsel %vm1659, %v1619, 0
  %1663 = vmatprep.subr.bf16.mxu0 0
  %1664 = vmatpush1.bf16.msra.mxu0 %v1651
  %1665 = vmatprep.subr.bf16.mxu0 0
  %1666 = vmatpush1.bf16.msra.mxu0 %v1652
  %1667 = vmatprep.subr.bf16.mxu0 0
  %1668 = vmatpush1.bf16.msra.mxu0 %v1653
  %1669 = vmatprep.subr.bf16.mxu0 0
  %1670 = vmatpush1.bf16.msra.mxu0 %v1654
  %1671 = vmatprep.subr.bf16.mxu0 0
  %1672 = vmatpush1.bf16.msra.mxu0 0
  %1673 = vmatprep.subr.bf16.mxu0 0
  %1674 = vmatpush1.bf16.msra.mxu0 0
  %1675 = vmatprep.subr.bf16.mxu0 0
  %1676 = vmatpush1.bf16.msra.mxu0 0
  %1677 = vmatprep.subr.bf16.mxu0 0
  %1678 = vmatpush1.bf16.msra.mxu0 0
  %1679 = vmatprep.subr.bf16.mxu0 0
  %1680 = vmatpush1.bf16.msra.mxu0 0
  %1681 = vmatprep.subr.bf16.mxu0 0
  %1682 = vmatpush1.bf16.msra.mxu0 0
  %1683 = vmatprep.subr.bf16.mxu0 0
  %1684 = vmatpush1.bf16.msra.mxu0 0
  %1685 = vmatprep.subr.bf16.mxu0 0
  %1686 = vmatpush1.bf16.msra.mxu0 0
  %1687 = vmatprep.subr.bf16.mxu0 0
  %1688 = vmatpush1.bf16.msra.mxu0 0
  %1689 = vmatprep.subr.bf16.mxu0 0
  %1690 = vmatpush1.bf16.msra.mxu0 0
  %1691 = vmatprep.subr.bf16.mxu0 0
  %1692 = vmatpush1.bf16.msra.mxu0 0
  %1693 = vmatprep.subr.bf16.mxu0 0
  %1694 = vmatpush1.bf16.msra.mxu0 0
  %1695 = vmatprep.mubr.bf16.mxu0 0
  %1696 = vmatmul.mubr.bf16.gmra.mrb[0].mxu0 %v1661
  %v1697 = vpop.f32.mrb[0].mxu0
  %v1698 = vadd.f32 %v1633, %v1697
  %v1699 = vpop.f32.mrb[0].mxu0
  %v1700 = vpop.f32.mrb[0].mxu0
  %v1701 = vpop.f32.mrb[0].mxu0
  %1702 = vdwg.mxu0
  %vm1703 = vcmask 261120
  %1704 = vst.msk [vmem:[#allocation2] sm:$0xff] %vm1703, %v1563
  %1706 = vrot.lane.b32.xlu0 %v1568, 32
  %v1707 = vpop.permute.xlu0 %1706
  %vm1709 = vcmask 523520
  %1710 = vst.msk [vmem:[#allocation2] sm:$0xff] %vm1709, %v1707
  %1712 = vrot.lane.b32.xlu0 %v1573, 64
  %v1713 = vpop.permute.xlu0 %1712
  %vm1715 = vcmask 785920
  %1716 = vst.msk [vmem:[#allocation2] sm:$0xff] %vm1715, %v1713
  %1718 = vrot.lane.b32.xlu0 %v1578, 96
  %v1719 = vpop.permute.xlu0 %1718
  %vm1721 = vcmask 1048320
  %1722 = vst.msk [vmem:[#allocation2] sm:$0xff] %vm1721, %v1719
  %1723 = vst.msk [vmem:[#allocation2 + $0x8] sm:$0xff] %vm1703, %v1583
  %1725 = vrot.lane.b32.xlu0 %v1588, 32
  %v1726 = vpop.permute.xlu0 %1725
  %1728 = vst.msk [vmem:[#allocation2 + $0x8] sm:$0xff] %vm1709, %v1726
  %1730 = vrot.lane.b32.xlu0 %v1593, 64
  %v1731 = vpop.permute.xlu0 %1730
  %1733 = vst.msk [vmem:[#allocation2 + $0x8] sm:$0xff] %vm1715, %v1731
  %1735 = vrot.lane.b32.xlu0 %v1698, 96
  %v1736 = vpop.permute.xlu0 %1735
  %1738 = vst.msk [vmem:[#allocation2 + $0x8] sm:$0xff] %vm1721, %v1736
  %v1739 = vld [vmem:[#allocation2] sm:$0xff]
  %v1740 = vld [vmem:[#allocation2 + $0x8] sm:$0xff]
  %v1741 = vpack.c.bf16 %v1739, %v1739
  %v1742 = vpack.c.bf16 %v1740, %v1740
  %v1743 = vld [vmem:[%s8] sm:$0xff]
  %v1744 = vld [vmem:[%s8 + $0x8] sm:$0xff]
  %v1745 = vld [vmem:[%s8 + $0x10] sm:$0xff]
  %v1746 = vld [vmem:[%s8 + $0x18] sm:$0xff]
  %v1747 = vld [vmem:[%s8 + $0x20] sm:$0xff]
  %v1748 = vld [vmem:[%s8 + $0x28] sm:$0xff]
  %v1749 = vld [vmem:[%s8 + $0x30] sm:$0xff]
  %v1750 = vld [vmem:[%s8 + $0x38] sm:$0xff]
  %v1751 = vld [vmem:[%s8 + $0x40] sm:$0xff]
  %v1752 = vld [vmem:[%s8 + $0x48] sm:$0xff]
  %v1753 = vld [vmem:[%s8 + $0x50] sm:$0xff]
  %v1754 = vld [vmem:[%s8 + $0x58] sm:$0xff]
  %v1755 = vld [vmem:[%s8 + $0x60] sm:$0xff]
  %v1756 = vld [vmem:[%s8 + $0x68] sm:$0xff]
  %v1757 = vld [vmem:[%s8 + $0x70] sm:$0xff]
  %v1758 = vld [vmem:[%s8 + $0x78] sm:$0xff]
  %v1759 = vld [vmem:[%s8 + $0x80] sm:$0xff]
  %v1760 = vld [vmem:[%s8 + $0x88] sm:$0xff]
  %v1761 = vld [vmem:[%s8 + $0x90] sm:$0xff]
  %v1762 = vld [vmem:[%s8 + $0x98] sm:$0xff]
  %v1763 = vld [vmem:[%s8 + $0xa0] sm:$0xff]
  %v1764 = vld [vmem:[%s8 + $0xa8] sm:$0xff]
  %v1765 = vld [vmem:[%s8 + $0xb0] sm:$0xff]
  %v1766 = vld [vmem:[%s8 + $0xb8] sm:$0xff]
  %v1767 = vld [vmem:[%s8 + $0xc0] sm:$0xff]
  %v1768 = vld [vmem:[%s8 + $0xc8] sm:$0xff]
  %v1769 = vld [vmem:[%s8 + $0xd0] sm:$0xff]
  %v1770 = vld [vmem:[%s8 + $0xd8] sm:$0xff]
  %v1771 = vld [vmem:[%s8 + $0xe0] sm:$0xff]
  %v1772 = vld [vmem:[%s8 + $0xe8] sm:$0xff]
  %v1773 = vld [vmem:[%s8 + $0xf0] sm:$0xff]
  %v1774 = vld [vmem:[%s8 + $0xf8] sm:$0xff]
  %v1775 = vld [vmem:[%s9] sm:$0x3]
  %v1777 = vlaneseq
  %v1778 = vshrl.u32 %v1777, 7
  %v1779 = vsub.s32 0, %v1778
  %v1780 = vrot.slane %v1775, %v1779
  %v1781 = vlaneseq
  %v1782 = vshrl.u32 %v1781, 7
  %v1783 = vsub.s32 1, %v1782
  %v1784 = vrot.slane %v1775, %v1783
  %v1819 = vunpack.c.l.b16 %v1743
  %v1820 = vunpack.c.h.b16 %v1743
  %v1821 = vunpack.c.l.b16 %v1744
  %v1822 = vunpack.c.h.b16 %v1744
  %v1823 = vunpack.c.l.b16 %v1745
  %v1824 = vunpack.c.h.b16 %v1745
  %v1825 = vunpack.c.l.b16 %v1746
  %v1826 = vunpack.c.h.b16 %v1746
  %v1827 = vunpack.c.l.b16 %v1747
  %v1828 = vunpack.c.h.b16 %v1747
  %v1829 = vunpack.c.l.b16 %v1748
  %v1830 = vunpack.c.h.b16 %v1748
  %v1831 = vunpack.c.l.b16 %v1749
  %v1832 = vunpack.c.h.b16 %v1749
  %v1833 = vunpack.c.l.b16 %v1750
  %v1834 = vunpack.c.h.b16 %v1750
  %v1835 = vunpack.c.l.b16 %v1751
  %v1836 = vunpack.c.h.b16 %v1751
  %v1837 = vunpack.c.l.b16 %v1752
  %v1838 = vunpack.c.h.b16 %v1752
  %v1839 = vunpack.c.l.b16 %v1753
  %v1840 = vunpack.c.h.b16 %v1753
  %v1841 = vunpack.c.l.b16 %v1754
  %v1842 = vunpack.c.h.b16 %v1754
  %v1843 = vunpack.c.l.b16 %v1755
  %v1844 = vunpack.c.h.b16 %v1755
  %v1845 = vunpack.c.l.b16 %v1756
  %v1846 = vunpack.c.h.b16 %v1756
  %v1847 = vunpack.c.l.b16 %v1757
  %v1848 = vunpack.c.h.b16 %v1757
  %v1849 = vunpack.c.l.b16 %v1758
  %v1850 = vunpack.c.h.b16 %v1758
  %v1851 = vunpack.c.l.b16 %v1759
  %v1852 = vunpack.c.h.b16 %v1759
  %v1853 = vunpack.c.l.b16 %v1760
  %v1854 = vunpack.c.h.b16 %v1760
  %v1855 = vunpack.c.l.b16 %v1761
  %v1856 = vunpack.c.h.b16 %v1761
  %v1857 = vunpack.c.l.b16 %v1762
  %v1858 = vunpack.c.h.b16 %v1762
  %v1859 = vunpack.c.l.b16 %v1763
  %v1860 = vunpack.c.h.b16 %v1763
  %v1861 = vunpack.c.l.b16 %v1764
  %v1862 = vunpack.c.h.b16 %v1764
  %v1863 = vunpack.c.l.b16 %v1765
  %v1864 = vunpack.c.h.b16 %v1765
  %v1865 = vunpack.c.l.b16 %v1766
  %v1866 = vunpack.c.h.b16 %v1766
  %v1867 = vunpack.c.l.b16 %v1767
  %v1868 = vunpack.c.h.b16 %v1767
  %v1869 = vunpack.c.l.b16 %v1768
  %v1870 = vunpack.c.h.b16 %v1768
  %v1871 = vunpack.c.l.b16 %v1769
  %v1872 = vunpack.c.h.b16 %v1769
  %v1873 = vunpack.c.l.b16 %v1770
  %v1874 = vunpack.c.h.b16 %v1770
  %v1875 = vunpack.c.l.b16 %v1771
  %v1876 = vunpack.c.h.b16 %v1771
  %v1877 = vunpack.c.l.b16 %v1772
  %v1878 = vunpack.c.h.b16 %v1772
  %v1879 = vunpack.c.l.b16 %v1773
  %v1880 = vunpack.c.h.b16 %v1773
  %v1881 = vunpack.c.l.b16 %v1774
  %v1882 = vunpack.c.h.b16 %v1774
  %v1883 = vpack.c.b16 %v1821, %v1819
  %v1884 = vpack.c.b16 %v1822, %v1820
  %v1885 = vpack.c.b16 %v1825, %v1823
  %v1886 = vpack.c.b16 %v1826, %v1824
  %v1887 = vpack.c.b16 %v1829, %v1827
  %v1888 = vpack.c.b16 %v1830, %v1828
  %v1889 = vpack.c.b16 %v1833, %v1831
  %v1890 = vpack.c.b16 %v1834, %v1832
  %v1891 = vpack.c.b16 %v1837, %v1835
  %v1892 = vpack.c.b16 %v1838, %v1836
  %v1893 = vpack.c.b16 %v1841, %v1839
  %v1894 = vpack.c.b16 %v1842, %v1840
  %v1895 = vpack.c.b16 %v1845, %v1843
  %v1896 = vpack.c.b16 %v1846, %v1844
  %v1897 = vpack.c.b16 %v1849, %v1847
  %v1898 = vpack.c.b16 %v1850, %v1848
  %v1899 = vpack.c.b16 %v1853, %v1851
  %v1900 = vpack.c.b16 %v1854, %v1852
  %v1901 = vpack.c.b16 %v1857, %v1855
  %v1902 = vpack.c.b16 %v1858, %v1856
  %v1903 = vpack.c.b16 %v1861, %v1859
  %v1904 = vpack.c.b16 %v1862, %v1860
  %v1905 = vpack.c.b16 %v1865, %v1863
  %v1906 = vpack.c.b16 %v1866, %v1864
  %v1907 = vpack.c.b16 %v1869, %v1867
  %v1908 = vpack.c.b16 %v1870, %v1868
  %v1909 = vpack.c.b16 %v1873, %v1871
  %v1910 = vpack.c.b16 %v1874, %v1872
  %v1911 = vpack.c.b16 %v1877, %v1875
  %v1912 = vpack.c.b16 %v1878, %v1876
  %v1913 = vpack.c.b16 %v1881, %v1879
  %v1914 = vpack.c.b16 %v1882, %v1880
  %1947 = vmatprep.subr.bf16.mxu0 %v1884
  %1948 = vmatpush1.bf16.msra.mxu0 %v1883
  %1949 = vmatprep.subr.bf16.mxu0 %v1886
  %1950 = vmatpush1.bf16.msra.mxu0 %v1885
  %1951 = vmatprep.subr.bf16.mxu0 %v1888
  %1952 = vmatpush1.bf16.msra.mxu0 %v1887
  %1953 = vmatprep.subr.bf16.mxu0 %v1890
  %1954 = vmatpush1.bf16.msra.mxu0 %v1889
  %1955 = vmatprep.subr.bf16.mxu0 %v1892
  %1956 = vmatpush1.bf16.msra.mxu0 %v1891
  %1957 = vmatprep.subr.bf16.mxu0 %v1894
  %1958 = vmatpush1.bf16.msra.mxu0 %v1893
  %1959 = vmatprep.subr.bf16.mxu0 %v1896
  %1960 = vmatpush1.bf16.msra.mxu0 %v1895
  %1961 = vmatprep.subr.bf16.mxu0 %v1898
  %1962 = vmatpush1.bf16.msra.mxu0 %v1897
  %1963 = vmatprep.subr.bf16.mxu0 %v1900
  %1964 = vmatpush1.bf16.msra.mxu0 %v1899
  %1965 = vmatprep.subr.bf16.mxu0 %v1902
  %1966 = vmatpush1.bf16.msra.mxu0 %v1901
  %1967 = vmatprep.subr.bf16.mxu0 %v1904
  %1968 = vmatpush1.bf16.msra.mxu0 %v1903
  %1969 = vmatprep.subr.bf16.mxu0 %v1906
  %1970 = vmatpush1.bf16.msra.mxu0 %v1905
  %1971 = vmatprep.subr.bf16.mxu0 %v1908
  %1972 = vmatpush1.bf16.msra.mxu0 %v1907
  %1973 = vmatprep.subr.bf16.mxu0 %v1910
  %1974 = vmatpush1.bf16.msra.mxu0 %v1909
  %1975 = vmatprep.subr.bf16.mxu0 %v1912
  %1976 = vmatpush1.bf16.msra.mxu0 %v1911
  %1977 = vmatprep.subr.bf16.mxu0 %v1914
  %1978 = vmatpush1.bf16.msra.mxu0 %v1913
  %1979 = vmatprep.mubr.bf16.mxu0 %v1742
  %1980 = vmatmul.mubr.bf16.gmra.mrb[0].mxu0 %v1741
  %v1981 = vpop.f32.mrb[0].mxu0
  %v1982 = vadd.f32 %v1780, %v1981
  %v1983 = vpop.f32.mrb[0].mxu0
  %v1984 = vadd.f32 %v1784, %v1983
  %v1985 = vpop.f32.mrb[0].mxu0
  %v1986 = vpop.f32.mrb[0].mxu0
  %1987 = vdwg.mxu0
  %v1988 = vmax.f32 %v1982, 0.0
  %v1989 = vmax.f32 %v1984, 0.0
  %v1990 = vpack.c.bf16 %v1988, %v1988
  %v1991 = vpack.c.bf16 %v1989, %v1989
  %v1992 = vld [vmem:[%s10] sm:$0xf]
  %v1993 = vld [vmem:[%s10 + $0x4] sm:$0xf]
  %v1994 = vld [vmem:[%s10 + $0x8] sm:$0xf]
  %v1995 = vld [vmem:[%s10 + $0xc] sm:$0xf]
  %v1996 = vld [vmem:[%s10 + $0x10] sm:$0xf]
  %v1997 = vld [vmem:[%s10 + $0x14] sm:$0xf]
  %v1998 = vld [vmem:[%s10 + $0x18] sm:$0xf]
  %v1999 = vld [vmem:[%s10 + $0x1c] sm:$0xf]
  %v2000 = vld [vmem:[%s10 + $0x20] sm:$0xf]
  %v2001 = vld [vmem:[%s10 + $0x24] sm:$0xf]
  %v2002 = vld [vmem:[%s10 + $0x28] sm:$0xf]
  %v2003 = vld [vmem:[%s10 + $0x2c] sm:$0xf]
  %v2004 = vld [vmem:[%s10 + $0x30] sm:$0xf]
  %v2005 = vld [vmem:[%s10 + $0x34] sm:$0xf]
  %v2006 = vld [vmem:[%s10 + $0x38] sm:$0xf]
  %v2007 = vld [vmem:[%s10 + $0x3c] sm:$0xf]
  %v2008 = vld [vmem:[%s10 + $0x40] sm:$0xf]
  %v2009 = vld [vmem:[%s10 + $0x44] sm:$0xf]
  %v2010 = vld [vmem:[%s10 + $0x48] sm:$0xf]
  %v2011 = vld [vmem:[%s10 + $0x4c] sm:$0xf]
  %v2012 = vld [vmem:[%s10 + $0x50] sm:$0xf]
  %v2013 = vld [vmem:[%s10 + $0x54] sm:$0xf]
  %v2014 = vld [vmem:[%s10 + $0x58] sm:$0xf]
  %v2015 = vld [vmem:[%s10 + $0x5c] sm:$0xf]
  %v2016 = vld [vmem:[%s10 + $0x60] sm:$0xf]
  %v2017 = vld [vmem:[%s10 + $0x64] sm:$0xf]
  %v2018 = vld [vmem:[%s10 + $0x68] sm:$0xf]
  %v2019 = vld [vmem:[%s10 + $0x6c] sm:$0xf]
  %v2020 = vld [vmem:[%s10 + $0x70] sm:$0xf]
  %v2021 = vld [vmem:[%s10 + $0x74] sm:$0xf]
  %v2022 = vld [vmem:[%s10 + $0x78] sm:$0xf]
  %v2023 = vld [vmem:[%s10 + $0x7c] sm:$0xf]
  %v2024 = vld [vmem:[%s11] sm:$0x1]
  %v2026 = vlaneseq
  %v2027 = vshrl.u32 %v2026, 7
  %v2028 = vsub.s32 0, %v2027
  %v2029 = vrot.slane %v2024, %v2028
  %v2063 = vunpack.c.l.b16 %v1992
  %v2064 = vunpack.c.l.b16 %v1993
  %v2065 = vunpack.c.l.b16 %v1994
  %v2066 = vunpack.c.l.b16 %v1995
  %v2067 = vunpack.c.l.b16 %v1996
  %v2068 = vunpack.c.l.b16 %v1997
  %v2069 = vunpack.c.l.b16 %v1998
  %v2070 = vunpack.c.l.b16 %v1999
  %v2071 = vunpack.c.l.b16 %v2000
  %v2072 = vunpack.c.l.b16 %v2001
  %v2073 = vunpack.c.l.b16 %v2002
  %v2074 = vunpack.c.l.b16 %v2003
  %v2075 = vunpack.c.l.b16 %v2004
  %v2076 = vunpack.c.l.b16 %v2005
  %v2077 = vunpack.c.l.b16 %v2006
  %v2078 = vunpack.c.l.b16 %v2007
  %v2079 = vunpack.c.l.b16 %v2008
  %v2080 = vunpack.c.l.b16 %v2009
  %v2081 = vunpack.c.l.b16 %v2010
  %v2082 = vunpack.c.l.b16 %v2011
  %v2083 = vunpack.c.l.b16 %v2012
  %v2084 = vunpack.c.l.b16 %v2013
  %v2085 = vunpack.c.l.b16 %v2014
  %v2086 = vunpack.c.l.b16 %v2015
  %v2087 = vunpack.c.l.b16 %v2016
  %v2088 = vunpack.c.l.b16 %v2017
  %v2089 = vunpack.c.l.b16 %v2018
  %v2090 = vunpack.c.l.b16 %v2019
  %v2091 = vunpack.c.l.b16 %v2020
  %v2092 = vunpack.c.l.b16 %v2021
  %v2093 = vunpack.c.l.b16 %v2022
  %v2094 = vunpack.c.l.b16 %v2023
  %v2095 = vpack.c.b16 %v2064, %v2063
  %v2096 = vpack.c.b16 %v2066, %v2065
  %v2097 = vpack.c.b16 %v2068, %v2067
  %v2098 = vpack.c.b16 %v2070, %v2069
  %v2099 = vpack.c.b16 %v2072, %v2071
  %v2100 = vpack.c.b16 %v2074, %v2073
  %v2101 = vpack.c.b16 %v2076, %v2075
  %v2102 = vpack.c.b16 %v2078, %v2077
  %v2103 = vpack.c.b16 %v2080, %v2079
  %v2104 = vpack.c.b16 %v2082, %v2081
  %v2105 = vpack.c.b16 %v2084, %v2083
  %v2106 = vpack.c.b16 %v2086, %v2085
  %v2107 = vpack.c.b16 %v2088, %v2087
  %v2108 = vpack.c.b16 %v2090, %v2089
  %v2109 = vpack.c.b16 %v2092, %v2091
  %v2110 = vpack.c.b16 %v2094, %v2093
  %2127 = vmatprep.subr.bf16.mxu0 0
  %2128 = vmatpush1.bf16.msra.mxu0 %v2095
  %2129 = vmatprep.subr.bf16.mxu0 0
  %2130 = vmatpush1.bf16.msra.mxu0 %v2096
  %2131 = vmatprep.subr.bf16.mxu0 0
  %2132 = vmatpush1.bf16.msra.mxu0 %v2097
  %2133 = vmatprep.subr.bf16.mxu0 0
  %2134 = vmatpush1.bf16.msra.mxu0 %v2098
  %2135 = vmatprep.subr.bf16.mxu0 0
  %2136 = vmatpush1.bf16.msra.mxu0 %v2099
  %2137 = vmatprep.subr.bf16.mxu0 0
  %2138 = vmatpush1.bf16.msra.mxu0 %v2100
  %2139 = vmatprep.subr.bf16.mxu0 0
  %2140 = vmatpush1.bf16.msra.mxu0 %v2101
  %2141 = vmatprep.subr.bf16.mxu0 0
  %2142 = vmatpush1.bf16.msra.mxu0 %v2102
  %2143 = vmatprep.subr.bf16.mxu0 0
  %2144 = vmatpush1.bf16.msra.mxu0 %v2103
  %2145 = vmatprep.subr.bf16.mxu0 0
  %2146 = vmatpush1.bf16.msra.mxu0 %v2104
  %2147 = vmatprep.subr.bf16.mxu0 0
  %2148 = vmatpush1.bf16.msra.mxu0 %v2105
  %2149 = vmatprep.subr.bf16.mxu0 0
  %2150 = vmatpush1.bf16.msra.mxu0 %v2106
  %2151 = vmatprep.subr.bf16.mxu0 0
  %2152 = vmatpush1.bf16.msra.mxu0 %v2107
  %2153 = vmatprep.subr.bf16.mxu0 0
  %2154 = vmatpush1.bf16.msra.mxu0 %v2108
  %2155 = vmatprep.subr.bf16.mxu0 0
  %2156 = vmatpush1.bf16.msra.mxu0 %v2109
  %2157 = vmatprep.subr.bf16.mxu0 0
  %2158 = vmatpush1.bf16.msra.mxu0 %v2110
  %2159 = vmatprep.mubr.bf16.mxu0 %v1991
  %2160 = vmatmul.mubr.bf16.gmra.mrb[0].mxu0 %v1990
  %v2161 = vpop.f32.mrb[0].mxu0
  %v2162 = vadd.f32 %v2029, %v2161
  %v2163 = vpop.f32.mrb[0].mxu0
  %v2164 = vpop.f32.mrb[0].mxu0
  %v2165 = vpop.f32.mrb[0].mxu0
  %2166 = vdwg.mxu0
  %2167 = vst [vmem:[%s12] sm:$0xff] %v2162
  // Predicated region
  $region50: #{parallel_densenet_forward.1} parent=0 // pred_check
    _
  $region51: #{parallel_densenet_forward.1} parent=0 // pred_check_branch
    %2169 = sbr.rel (0) target = $region53
  $region52: #{parallel_densenet_forward.1} parent=0 // pred_region
    _
  $region53: #{parallel_densenet_forward.1} parent=0 // pred_fallthru
    _
  // Predicated region
  $region54: #{parallel_densenet_forward.1} parent=0 // pred_check
    _
  $region55: #{parallel_densenet_forward.1} parent=0 // pred_check_branch
    %2171 = sbr.rel (0) target = $region57
  $region56: #{parallel_densenet_forward.1} parent=0 // pred_region
    _
  $region57: #{parallel_densenet_forward.1} parent=0 // pred_fallthru
    _

</llo_original>
